<compile_context>
chip_gen: v6e
topology: v6e:2x2x1
jax: 0.10.0
libtpu: 0.0.40
codegen_flags: <defaults>
</compile_context>

<pallas_src>
import functools

import jax
import jax.numpy as jnp
from jax.experimental import pallas as pl
from jax.experimental.pallas import tpu as pltpu

EPS = 1e-5
ACT_DTYPE = jnp.bfloat16   # storage dtype for inter-layer activations
CPAD = 128                 # lane width; 64-channel stages are padded to this
VMEM_LIMIT = 32 * 1024 * 1024


def _pick_tile(dim, candidates):
    """Largest candidate tile that evenly divides `dim`, else the full dim."""
    for c in candidates:
        if dim % c == 0:
            return c
    return dim


def _pad_axis(a, axis, target, value=0.0):
    if a.shape[axis] == target:
        return a
    pads = [(0, 0)] * a.ndim
    pads[axis] = (0, target - a.shape[axis])
    return jnp.pad(a, pads, constant_values=value)


# ---------------------------------------------------------------------------
# Tiled MXU matmul (+bias) kernel  (used by im2col convs and the FC head)
# ---------------------------------------------------------------------------

def _matmul_bias_kernel(a_ref, b_ref, bias_ref, o_ref, acc_ref):
    @pl.when(pl.program_id(2) == 0)
    def _():
        acc_ref[...] = jnp.zeros_like(acc_ref)

    acc_ref[...] += jnp.dot(a_ref[...], b_ref[...],
                            preferred_element_type=jnp.float32)

    @pl.when(pl.program_id(2) == pl.num_programs(2) - 1)
    def _():
        o_ref[...] = (acc_ref[...] + bias_ref[...]).astype(o_ref.dtype)


def matmul_bias(a, b, bias, out_dtype=ACT_DTYPE):
    """[M,K] @ [K,N] + [N]; bf16 MXU inputs, f32 accumulation, tiled grid."""
    M, K = a.shape
    _, N = b.shape
    tm = _pick_tile(M, (1024, 512, 256, 128))
    tn = _pick_tile(N, (512, 256, 128))
    tk = _pick_tile(K, (1024, 512, 256, 128))
    a_bf = a.astype(jnp.bfloat16)          # no-op: activations already bf16
    b_bf = b.astype(jnp.bfloat16)
    bias2 = bias.reshape(1, N).astype(jnp.float32)
    grid = (M // tm, N // tn, K // tk)
    return pl.pallas_call(
        _matmul_bias_kernel,
        out_shape=jax.ShapeDtypeStruct((M, N), out_dtype),
        grid_spec=pltpu.PrefetchScalarGridSpec(
            num_scalar_prefetch=0,
            grid=grid,
            in_specs=[pl.BlockSpec((tm, tk), lambda i, j, k: (i, k)),
                      pl.BlockSpec((tk, tn), lambda i, j, k: (k, j)),
                      pl.BlockSpec((1, tn), lambda i, j, k: (0, j))],
            out_specs=pl.BlockSpec((tm, tn), lambda i, j, k: (i, j)),
            scratch_shapes=[pltpu.VMEM((tm, tn), jnp.float32)]),
        compiler_params=pltpu.CompilerParams(
            dimension_semantics=("parallel", "parallel", "arbitrary"),
            vmem_limit_bytes=VMEM_LIMIT),
    )(a_bf, b_bf, bias2)


# ---------------------------------------------------------------------------
# Direct (im2col-free) 3x3 / stride-1 / pad-1 convolution
# ---------------------------------------------------------------------------
# The zero-padded image is row-flattened to [Hp*Wp, Cin] plus a (Wp+1)-row
# zero halo on each side, so tap (di,dj) is a contiguous row window at offset
# di*Wp+dj.  Each tap is one big [Hp*Wp, Cin] x [Cin, tco] MXU matmul into an
# f32 VMEM accumulator; boundary (garbage) rows are simply never copied out.

def _conv3x3_s1_kernel(x_ref, w_ref, o_ref, acc_ref, *, Hp, Wp, H, W):
    L = Hp * Wp
    for t in range(9):
        di, dj = divmod(t, 3)
        a = x_ref[0, pl.ds(di * Wp + dj, L), :]
        contrib = jnp.dot(a, w_ref[t], preferred_element_type=jnp.float32)
        if t == 0:
            acc_ref[...] = contrib
        else:
            acc_ref[...] += contrib
    # Copy only the valid output rows (drop the padded-grid boundary rows).
    for h in range(H):
        o_ref[0, pl.ds(h * W, W), :] = (
            acc_ref[pl.ds((h + 1) * Wp + 1, W), :].astype(o_ref.dtype))


def conv3x3_s1(x_nhwc, w_hwio):
    N, H, W, Cin = x_nhwc.shape
    Cout = w_hwio.shape[3]
    Hp, Wp = H + 2, W + 2
    L = Hp * Wp
    halo = Wp + 1
    xp = jnp.pad(x_nhwc.astype(ACT_DTYPE), ((0, 0), (1, 1), (1, 1), (0, 0)))
    xf = xp.reshape(N, L, Cin)
    xf = jnp.pad(xf, ((0, 0), (halo, halo), (0, 0)))
    wt = w_hwio.reshape(9, Cin, Cout).astype(jnp.bfloat16)
    tco = _pick_tile(Cout, (256, 128))
    out = pl.pallas_call(
        functools.partial(_conv3x3_s1_kernel, Hp=Hp, Wp=Wp, H=H, W=W),
        out_shape=jax.ShapeDtypeStruct((N, H * W, Cout), ACT_DTYPE),
        grid_spec=pltpu.PrefetchScalarGridSpec(
            num_scalar_prefetch=0,
            grid=(Cout // tco, N),            # batch innermost -> weight block
            in_specs=[                        #   reused across batch elements
                pl.BlockSpec((1, L + 2 * halo, Cin), lambda c, n: (n, 0, 0)),
                pl.BlockSpec((9, Cin, tco), lambda c, n: (0, 0, c))],
            out_specs=pl.BlockSpec((1, H * W, tco), lambda c, n: (n, 0, c)),
            scratch_shapes=[pltpu.VMEM((L, tco), jnp.float32)]),
        compiler_params=pltpu.CompilerParams(
            dimension_semantics=("parallel", "parallel"),
            vmem_limit_bytes=VMEM_LIMIT),
    )(xf, wt)
    return out.reshape(N, H, W, Cout)


# ---------------------------------------------------------------------------
# Conv dispatcher: direct kernel for 3x3/s1, im2col (bf16) + matmul otherwise
# ---------------------------------------------------------------------------

def _im2col(x_nhwc, kh, kw, stride, pad):
    N, H, W, C = x_nhwc.shape
    Ho = (H + 2 * pad - kh) // stride + 1
    Wo = (W + 2 * pad - kw) // stride + 1
    xp = jnp.pad(x_nhwc, ((0, 0), (pad, pad), (pad, pad), (0, 0)))
    cols = []
    for i in range(kh):
        for j in range(kw):
            p = jax.lax.slice(
                xp, (0, i, j, 0),
                (N, i + (Ho - 1) * stride + 1, j + (Wo - 1) * stride + 1, C),
                (1, stride, stride, 1))
            cols.append(p)
    patches = jnp.stack(cols, axis=3)              # built directly in bf16
    return patches.reshape(N * Ho * Wo, kh * kw * C), (N, Ho, Wo)


def conv2d(x_nhwc, w_hwio, bias, stride, pad):
    kh, kw, cin, cout = w_hwio.shape
    x_bf = x_nhwc.astype(ACT_DTYPE)
    if kh == 3 and kw == 3 and stride == 1 and pad == 1 and bias is None:
        return conv3x3_s1(x_bf, w_hwio)
    patches, (N, Ho, Wo) = _im2col(x_bf, kh, kw, stride, pad)
    wmat = w_hwio.reshape(kh * kw * cin, cout)
    if bias is None:
        bias = jnp.zeros((cout,), jnp.float32)
    out = matmul_bias(patches, wmat, bias, out_dtype=ACT_DTYPE)
    return out.reshape(N, Ho, Wo, cout)


# ---------------------------------------------------------------------------
# BatchNorm (training-mode stats): parallel partial-sum pass + fused apply
# ---------------------------------------------------------------------------

def _bn_partial_stats_kernel(x_ref, sum_ref, sq_ref):
    x = x_ref[...].astype(jnp.float32)
    sum_ref[0] = jnp.sum(x, axis=0, keepdims=True)
    sq_ref[0] = jnp.sum(x * x, axis=0, keepdims=True)


def _bn_apply_kernel(x_ref, scale_ref, shift_ref, o_ref, *, relu):
    y = x_ref[...].astype(jnp.float32) * scale_ref[...] + shift_ref[...]
    if relu:
        y = jnp.maximum(y, 0.0)
    o_ref[...] = y.astype(o_ref.dtype)


def _bn_apply_res_kernel(x_ref, scale_ref, shift_ref, r_ref, o_ref, *, relu):
    y = (x_ref[...].astype(jnp.float32) * scale_ref[...] + shift_ref[...]
         + r_ref[...].astype(jnp.float32))
    if relu:
        y = jnp.maximum(y, 0.0)
    o_ref[...] = y.astype(o_ref.dtype)


def batchnorm(x_nhwc, gamma, beta, *, relu, residual=None):
    """BatchNorm2d (batch stats) + optional residual add + optional ReLU."""
    N, H, W, C = x_nhwc.shape
    M = N * H * W
    x2 = x_nhwc.reshape(M, C).astype(ACT_DTYPE)
    tm = _pick_tile(M, (1024, 512, 256, 128))
    G = M // tm
    grid = (G,)

    # Pass 1: per-tile partial sum / sumsq; every grid step writes its own
    # block -> fully "parallel" (keeps both v7x TensorCores busy).
    sums, sqs = pl.pallas_call(
        _bn_partial_stats_kernel,
        out_shape=(jax.ShapeDtypeStruct((G, 1, C), jnp.float32),
                   jax.ShapeDtypeStruct((G, 1, C), jnp.float32)),
        grid_spec=pltpu.PrefetchScalarGridSpec(
            num_scalar_prefetch=0,
            grid=grid,
            in_specs=[pl.BlockSpec((tm, C), lambda i: (i, 0))],
            out_specs=(pl.BlockSpec((1, 1, C), lambda i: (i, 0, 0)),
                       pl.BlockSpec((1, 1, C), lambda i: (i, 0, 0)))),
        compiler_params=pltpu.CompilerParams(
            dimension_semantics=("parallel",)),
    )(x2)

    # Tiny O(C) finalize as XLA glue: fold gamma/beta into per-channel
    # scale/shift used by the fused apply(+residual)(+ReLU) pass.
    s = jnp.sum(sums.reshape(G, C), axis=0)
    sq = jnp.sum(sqs.reshape(G, C), axis=0)
    mean = s / M
    var = jnp.maximum(sq / M - mean * mean, 0.0)
    scale = gamma.astype(jnp.float32) * jax.lax.rsqrt(var + EPS)
    shift = beta.astype(jnp.float32) - mean * scale
    scale = scale.reshape(1, C)
    shift = shift.reshape(1, C)

    # Pass 2: normalize (+residual)(+ReLU), tiled over M, bf16 out.
    if residual is None:
        out = pl.pallas_call(
            functools.partial(_bn_apply_kernel, relu=relu),
            out_shape=jax.ShapeDtypeStruct((M, C), ACT_DTYPE),
            grid_spec=pltpu.PrefetchScalarGridSpec(
                num_scalar_prefetch=0,
                grid=grid,
                in_specs=[pl.BlockSpec((tm, C), lambda i: (i, 0)),
                          pl.BlockSpec((1, C), lambda i: (0, 0)),
                          pl.BlockSpec((1, C), lambda i: (0, 0))],
                out_specs=pl.BlockSpec((tm, C), lambda i: (i, 0))),
            compiler_params=pltpu.CompilerParams(
                dimension_semantics=("parallel",)),
        )(x2, scale, shift)
    else:
        r2 = residual.reshape(M, C).astype(ACT_DTYPE)
        out = pl.pallas_call(
            functools.partial(_bn_apply_res_kernel, relu=relu),
            out_shape=jax.ShapeDtypeStruct((M, C), ACT_DTYPE),
            grid_spec=pltpu.PrefetchScalarGridSpec(
                num_scalar_prefetch=0,
                grid=grid,
                in_specs=[pl.BlockSpec((tm, C), lambda i: (i, 0)),
                          pl.BlockSpec((1, C), lambda i: (0, 0)),
                          pl.BlockSpec((1, C), lambda i: (0, 0)),
                          pl.BlockSpec((tm, C), lambda i: (i, 0))],
                out_specs=pl.BlockSpec((tm, C), lambda i: (i, 0))),
            compiler_params=pltpu.CompilerParams(
                dimension_semantics=("parallel",)),
        )(x2, scale, shift, r2)
    return out.reshape(N, H, W, C)


# ---------------------------------------------------------------------------
# MaxPool 3x3 / stride 2 / pad 1 : parity de-interleave + in-VMEM 9-tap max
# ---------------------------------------------------------------------------

def _maxpool_kernel(ee_ref, eo_ref, oe_ref, oo_ref, o_ref, *, Ho, Wo):
    f32 = jnp.float32
    m = ee_ref[0].astype(f32)
    m = jnp.maximum(m, eo_ref[0, :, pl.ds(0, Wo), :].astype(f32))
    m = jnp.maximum(m, eo_ref[0, :, pl.ds(1, Wo), :].astype(f32))
    m = jnp.maximum(m, oe_ref[0, pl.ds(0, Ho), :, :].astype(f32))
    m = jnp.maximum(m, oe_ref[0, pl.ds(1, Ho), :, :].astype(f32))
    m = jnp.maximum(m, oo_ref[0, pl.ds(0, Ho), pl.ds(0, Wo), :].astype(f32))
    m = jnp.maximum(m, oo_ref[0, pl.ds(0, Ho), pl.ds(1, Wo), :].astype(f32))
    m = jnp.maximum(m, oo_ref[0, pl.ds(1, Ho), pl.ds(0, Wo), :].astype(f32))
    m = jnp.maximum(m, oo_ref[0, pl.ds(1, Ho), pl.ds(1, Wo), :].astype(f32))
    o_ref[0] = m.astype(o_ref.dtype)


def maxpool_3x3_s2_p1(x_nhwc):
    N, H, W, C = x_nhwc.shape
    assert H % 2 == 0 and W % 2 == 0
    Ho, Wo = H // 2, W // 2
    x = x_nhwc.astype(ACT_DTYPE)
    neg = float("-inf")
    # Parity de-interleave (total bytes == input; no 9x tap amplification).
    # The shifted (i-1 / j-1) taps come from one -inf row/col of padding.
    x_ee = x[:, 0::2, 0::2, :]
    x_eo = jnp.pad(x[:, 0::2, 1::2, :], ((0, 0), (0, 0), (1, 0), (0, 0)),
                   constant_values=neg)
    x_oe = jnp.pad(x[:, 1::2, 0::2, :], ((0, 0), (1, 0), (0, 0), (0, 0)),
                   constant_values=neg)
    x_oo = jnp.pad(x[:, 1::2, 1::2, :], ((0, 0), (1, 0), (1, 0), (0, 0)),
                   constant_values=neg)
    out = pl.pallas_call(
        functools.partial(_maxpool_kernel, Ho=Ho, Wo=Wo),
        out_shape=jax.ShapeDtypeStruct((N, Ho, Wo, C), ACT_DTYPE),
        grid_spec=pltpu.PrefetchScalarGridSpec(
            num_scalar_prefetch=0,
            grid=(N,),
            in_specs=[
                pl.BlockSpec((1, Ho, Wo, C), lambda n: (n, 0, 0, 0)),
                pl.BlockSpec((1, Ho, Wo + 1, C), lambda n: (n, 0, 0, 0)),
                pl.BlockSpec((1, Ho + 1, Wo, C), lambda n: (n, 0, 0, 0)),
                pl.BlockSpec((1, Ho + 1, Wo + 1, C), lambda n: (n, 0, 0, 0))],
            out_specs=pl.BlockSpec((1, Ho, Wo, C), lambda n: (n, 0, 0, 0))),
        compiler_params=pltpu.CompilerParams(
            dimension_semantics=("parallel",)),
    )(x_ee, x_eo, x_oe, x_oo)
    return out


# ---------------------------------------------------------------------------
# Global average pool (AdaptiveAvgPool2d((1,1)) + Flatten), tiled over batch
# ---------------------------------------------------------------------------

def _avgpool_kernel(x_ref, o_ref, *, inv_hw):
    s = jnp.sum(x_ref[...].astype(jnp.float32), axis=1) * inv_hw
    o_ref[...] = s.astype(o_ref.dtype)


def global_avgpool(x_nhwc):
    N, H, W, C = x_nhwc.shape
    hw = H * W
    x3 = x_nhwc.reshape(N, hw, C).astype(ACT_DTYPE)
    tn = _pick_tile(N, (64, 32, 16, 8, 4, 2))
    return pl.pallas_call(
        functools.partial(_avgpool_kernel, inv_hw=1.0 / hw),
        out_shape=jax.ShapeDtypeStruct((N, C), ACT_DTYPE),
        grid_spec=pltpu.PrefetchScalarGridSpec(
            num_scalar_prefetch=0,
            grid=(N // tn,),
            in_specs=[pl.BlockSpec((tn, hw, C), lambda i: (i, 0, 0))],
            out_specs=pl.BlockSpec((tn, C), lambda i: (i, 0))),
        compiler_params=pltpu.CompilerParams(
            dimension_semantics=("parallel",)),
    )(x3)


# ---------------------------------------------------------------------------
# Parameters (deterministic synthetic init, true PyTorch shapes)
# ---------------------------------------------------------------------------

def _kaiming_conv(key, kh, kw, cin, cout):
    fan_out = kh * kw * cout
    std = (2.0 / fan_out) ** 0.5
    return jax.random.normal(key, (kh, kw, cin, cout), jnp.float32) * std


def init_resnet_params(key, in_channels=3, layers=(1, 1, 1, 1), num_classes=10):
    keys = iter(jax.random.split(key, 256))
    params = {}
    params["conv0_w"] = _kaiming_conv(next(keys), 7, 7, in_channels, 64)
    params["bn0_g"] = jnp.ones((64,), jnp.float32)
    params["bn0_b"] = jnp.zeros((64,), jnp.float32)

    stages = []
    last_c = 64
    stage_channels = (64, 128, 256, 512)
    stage_strides = (1, 2, 2, 2)
    for c, n_blocks, stride in zip(stage_channels, layers, stage_strides):
        blocks = []
        for b in range(n_blocks):
            blk_stride = stride if b == 0 else 1
            blk = {"stride": blk_stride}
            blk["conv1_w"] = _kaiming_conv(next(keys), 3, 3, last_c, c)
            blk["bn1_g"] = jnp.ones((c,), jnp.float32)
            blk["bn1_b"] = jnp.zeros((c,), jnp.float32)
            blk["conv2_w"] = _kaiming_conv(next(keys), 3, 3, c, c)
            blk["bn2_g"] = jnp.ones((c,), jnp.float32)
            blk["bn2_b"] = jnp.zeros((c,), jnp.float32)
            if b == 0 and stride != 1:
                # downsample = Conv2d(last_c, c, 1, stride) [bias=True] + BN
                blk["convd_w"] = _kaiming_conv(next(keys), 1, 1, last_c, c)
                bound = 1.0 / (last_c ** 0.5)
                blk["convd_b"] = jax.random.uniform(
                    next(keys), (c,), jnp.float32, -bound, bound)
                blk["bnd_g"] = jnp.ones((c,), jnp.float32)
                blk["bnd_b"] = jnp.zeros((c,), jnp.float32)
            blocks.append(blk)
            last_c = c
        stages.append(blocks)
    params["stages"] = stages

    bound = 1.0 / (512 ** 0.5)
    params["fc_w"] = jax.random.uniform(
        next(keys), (512, num_classes), jnp.float32, -bound, bound)
    params["fc_b"] = jax.random.uniform(
        next(keys), (num_classes,), jnp.float32, -bound, bound)
    return params


# ---------------------------------------------------------------------------
# Forward (channels of 64-wide stages zero-padded to CPAD=128; exact math)
# ---------------------------------------------------------------------------

def basic_block_forward(x, blk):
    stride = blk["stride"]
    cin_act = x.shape[-1]                       # channel count carried by x
    c = blk["bn1_g"].shape[0]
    c_pad = max(c, CPAD)

    w1 = _pad_axis(_pad_axis(blk["conv1_w"], 2, cin_act), 3, c_pad)
    out = conv2d(x, w1, None, stride, 1)
    out = batchnorm(out, _pad_axis(blk["bn1_g"], 0, c_pad, 1.0),
                    _pad_axis(blk["bn1_b"], 0, c_pad, 0.0), relu=True)

    w2 = _pad_axis(_pad_axis(blk["conv2_w"], 2, c_pad), 3, c_pad)
    out = conv2d(out, w2, None, 1, 1)

    if "convd_w" in blk:
        wd = _pad_axis(_pad_axis(blk["convd_w"], 2, cin_act), 3, c_pad)
        bd = _pad_axis(blk["convd_b"], 0, c_pad, 0.0)
        identity = conv2d(x, wd, bd, stride, 0)
        identity = batchnorm(identity, _pad_axis(blk["bnd_g"], 0, c_pad, 1.0),
                             _pad_axis(blk["bnd_b"], 0, c_pad, 0.0),
                             relu=False)
    else:
        identity = x
    # bn2 + residual add + ReLU fused in the tiled BN apply pass
    out = batchnorm(out, _pad_axis(blk["bn2_g"], 0, c_pad, 1.0),
                    _pad_axis(blk["bn2_b"], 0, c_pad, 0.0),
                    relu=True, residual=identity)
    return out


def resnet_forward(params, x_nchw):
    x = jnp.transpose(x_nchw, (0, 2, 3, 1)).astype(ACT_DTYPE)  # NCHW -> NHWC
    cin = x.shape[-1]
    cin_pad = 8 if cin < 8 else cin          # sublane-align the stem im2col K
    x = _pad_axis(x, 3, cin_pad)

    c0 = params["bn0_g"].shape[0]
    c0_pad = max(c0, CPAD)
    # layer0: conv7x7 s2 p3 -> BN -> ReLU -> maxpool 3x3 s2 p1
    w0 = _pad_axis(_pad_axis(params["conv0_w"], 2, cin_pad), 3, c0_pad)
    x = conv2d(x, w0, None, 2, 3)
    x = batchnorm(x, _pad_axis(params["bn0_g"], 0, c0_pad, 1.0),
                  _pad_axis(params["bn0_b"], 0, c0_pad, 0.0), relu=True)
    x = maxpool_3x3_s2_p1(x)
    # layer1..layer4
    for blocks in params["stages"]:
        for blk in blocks:
            x = basic_block_forward(x, blk)
    # classifier: global avg pool -> flatten -> linear (logits in f32)
    pooled = global_avgpool(x)                                  # [N, 512]
    logits = matmul_bias(pooled, params["fc_w"], params["fc_b"],
                         out_dtype=jnp.float32)
    return logits


if __name__ == "__main__":
    key = jax.random.PRNGKey(0)
    pkey, xkey = jax.random.split(key)
    num_classes = 10
    params = init_resnet_params(pkey, in_channels=3, layers=(1, 1, 1, 1),
                                num_classes=num_classes)
    x = jax.random.normal(xkey, (2, 3, 32, 32), jnp.float32)  # NCHW input
    logits = resnet_forward(params, x)
    jax.block_until_ready(logits)
    assert logits.shape == (2, num_classes), logits.shape
    assert bool(jnp.all(jnp.isfinite(logits)))
    print("KERNEL_OK")
</pallas_src>

<mosaic_0001>
module attributes {stable_mosaic.version = 11 : i64} {
  func.func @_matmul_bias_kernel(%arg0: i32, %arg1: i32, %arg2: i32, %arg3: memref<512x392xbf16, #tpu.memory_space<vmem>>, %arg4: memref<392x128xbf16, #tpu.memory_space<vmem>>, %arg5: memref<1x128xf32, #tpu.memory_space<vmem>>, %arg6: memref<512x128xbf16, #tpu.memory_space<vmem>>, %arg7: memref<512x128xf32, #tpu.memory_space<vmem>>) attributes {dimension_semantics = [#tpu.dimension_semantics<parallel>, #tpu.dimension_semantics<parallel>, #tpu.dimension_semantics<arbitrary>], iteration_bounds = array<i64: 1, 1, 1>, scalar_prefetch = 0 : i64, scratch_operands = 1 : i64, tpu.core_type = #tpu.core_type<tc>, window_params = [{transform_indices = @transform_0, window_bounds = array<i64: 512, 392>}, {transform_indices = @transform_1, window_bounds = array<i64: 392, 128>}, {transform_indices = @transform_2, window_bounds = array<i64: 1, 128>}, {transform_indices = @transform_3, window_bounds = array<i64: 512, 128>}]} {
    %c0_i32 = arith.constant 0 : i32
    %0 = arith.cmpi eq, %arg2, %c0_i32 : i32
    %1 = arith.extui %0 : i1 to i32
    %c0_i32_0 = arith.constant 0 : i32
    %2 = arith.cmpi ne, %1, %c0_i32_0 : i32
    scf.if %2 {
      %cst_10 = arith.constant 0.000000e+00 : f32
      %12 = vector.broadcast %cst_10 : f32 to vector<512x128xf32>
      %c0_11 = arith.constant 0 : index
      %c0_12 = arith.constant 0 : index
      %13 = vector.load %arg7[%c0_11, %c0_12] : memref<512x128xf32, #tpu.memory_space<vmem>>, vector<512x128xf32>
      tpu.vector_store %arg7[%c0_11, %c0_12], %12 {strides = array<i32>} : memref<512x128xf32, #tpu.memory_space<vmem>>, vector<512x128xf32>,
    } else {
    }
    %c0 = arith.constant 0 : index
    %c0_1 = arith.constant 0 : index
    %3 = vector.load %arg7[%c0, %c0_1] : memref<512x128xf32, #tpu.memory_space<vmem>>, vector<512x128xf32>
    %c0_2 = arith.constant 0 : index
    %c0_3 = arith.constant 0 : index
    %4 = vector.load %arg3[%c0_2, %c0_3] : memref<512x392xbf16, #tpu.memory_space<vmem>>, vector<512x392xbf16>
    %c0_4 = arith.constant 0 : index
    %c0_5 = arith.constant 0 : index
    %5 = vector.load %arg4[%c0_4, %c0_5] : memref<392x128xbf16, #tpu.memory_space<vmem>>, vector<392x128xbf16>
    %cst = arith.constant dense<0.000000e+00> : vector<512x128xf32>
    %6 = tpu.matmul %4, %5, %cst {dimension_numbers = #tpu.dot_dimension_numbers<[1], [0], [0], [1], [0, 0, 1, 1], [], []>} : vector<512x392xbf16>, vector<392x128xbf16>, vector<512x128xf32> -> vector<512x128xf32>
    %7 = arith.addf %3, %6 : vector<512x128xf32>
    %c0_6 = arith.constant 0 : index
    %c0_7 = arith.constant 0 : index
    %8 = vector.load %arg7[%c0_6, %c0_7] : memref<512x128xf32, #tpu.memory_space<vmem>>, vector<512x128xf32>
    tpu.vector_store %arg7[%c0_6, %c0_7], %7 {strides = array<i32>} : memref<512x128xf32, #tpu.memory_space<vmem>>, vector<512x128xf32>,
    %c0_i32_8 = arith.constant 0 : i32
    %9 = arith.cmpi eq, %arg2, %c0_i32_8 : i32
    %10 = arith.extui %9 : i1 to i32
    %c0_i32_9 = arith.constant 0 : i32
    %11 = arith.cmpi ne, %10, %c0_i32_9 : i32
    scf.if %11 {
      %c0_10 = arith.constant 0 : index
      %c0_11 = arith.constant 0 : index
      %12 = vector.load %arg7[%c0_10, %c0_11] : memref<512x128xf32, #tpu.memory_space<vmem>>, vector<512x128xf32>
      %c0_12 = arith.constant 0 : index
      %c0_13 = arith.constant 0 : index
      %13 = vector.load %arg5[%c0_12, %c0_13] : memref<1x128xf32, #tpu.memory_space<vmem>>, vector<1x128xf32>
      %14 = vector.broadcast %13 : vector<1x128xf32> to vector<512x128xf32>
      %15 = arith.addf %12, %14 : vector<512x128xf32>
      %16 = arith.truncf %15 : vector<512x128xf32> to vector<512x128xbf16>
      %c0_14 = arith.constant 0 : index
      %c0_15 = arith.constant 0 : index
      %17 = vector.load %arg6[%c0_14, %c0_15] : memref<512x128xbf16, #tpu.memory_space<vmem>>, vector<512x128xbf16>
      tpu.vector_store %arg6[%c0_14, %c0_15], %16 {strides = array<i32>} : memref<512x128xbf16, #tpu.memory_space<vmem>>, vector<512x128xbf16>,
    } else {
    }
    return
  }
  func.func @transform_0(%arg0: i32, %arg1: i32, %arg2: i32) -> (i32, i32) {
    %c0_i32 = arith.constant 0 : i32
    return %arg0, %arg2 : i32, i32
  }
  func.func @transform_1(%arg0: i32, %arg1: i32, %arg2: i32) -> (i32, i32) {
    %c0_i32 = arith.constant 0 : i32
    return %arg2, %arg1 : i32, i32
  }
  func.func @transform_2(%arg0: i32, %arg1: i32, %arg2: i32) -> (i32, i32) {
    %c0_i32 = arith.constant 0 : i32
    %c0_i32_0 = arith.constant 0 : i32
    return %c0_i32, %arg1 : i32, i32
  }
  func.func @transform_3(%arg0: i32, %arg1: i32, %arg2: i32) -> (i32, i32) {
    %c0_i32 = arith.constant 0 : i32
    return %arg0, %arg1 : i32, i32
  }
}

</mosaic_0001>

<llo_original>
// kernel: tpu_custom_call.1
$region0: #{tpu_custom_call.1}
  #allocation0 [shape = 'u32[]', space=smem, size = 0x4, offset = 0x4, fixed_abs, tag = 'smem constant byte address 0x4 - core index']
  #allocation1 [shape = 'u32[144,128]{1,0:T(1,128)}', space=vmem, size = 0x12000, scoped, tag = 'internal scratch']
  #allocation2 [shape = 'f32[512,128]{1,0:T(8,128)}', space=vmem, size = 0x40000, scoped, tag = 'scratch operand']
  %s0 = inlined_call_operand.vmem [shape: bf16[512,392], index: 0, kind: input, shape index: {}]
  %s1 = inlined_call_operand.vmem [shape: bf16[392,128], index: 1, kind: input, shape index: {}]
  %s2 = inlined_call_operand.vmem [shape: f32[1,128], index: 2, kind: input, shape index: {}]
  %s3 = inlined_call_operand.hbm [shape: bf16[512,128], index: 3, kind: output, shape index: {}]
  %s4 = sld [smem:[#allocation0]]
  $region30: #{tpu_custom_call.1} parent=0
    _
  %s6 = ssub.s32 1, %s4
  %s7 = scalar_select 0, %s6, %s4
  $region1: #{tpu_custom_call.1} parent=0
    #allocation3 [shape = 'u8[131072]{0}', space=vmem, size = 0x20000, scoped, tag = 'output window, operand 0, single buffered']
    #allocation4 [shape = 's32[1]{0}', space=sflag, size = 0x4, scoped, tag = 'scoped memory for tpu_custom_call.1']
    %8 = vsyncpa [#allocation4], 0
    // Predicated region
    $region2: #{tpu_custom_call.1} parent=1 // pred_check
      _
    $region3: #{tpu_custom_call.1} parent=1 // pred_check_branch
      %10 = sbr.rel (0) target = $region5
    $region4: #{tpu_custom_call.1} parent=1 // pred_region
      _
    $region5: #{tpu_custom_call.1} parent=1 // pred_fallthru
      _
    // Predicated region
    $region6: #{tpu_custom_call.1} parent=1 // pred_check
      _
    $region7: #{tpu_custom_call.1} parent=1 // pred_check_branch
      %12 = sbr.rel (0) target = $region9
    $region8: #{tpu_custom_call.1} parent=1 // pred_region
      _
    $region9: #{tpu_custom_call.1} parent=1 // pred_fallthru
      _
    // Predicated region
    $region10: #{tpu_custom_call.1} parent=1 // pred_check
      _
    $region11: #{tpu_custom_call.1} parent=1 // pred_check_branch
      %14 = sbr.rel (0) target = $region13
    $region12: #{tpu_custom_call.1} parent=1 // pred_region
      _
    $region13: #{tpu_custom_call.1} parent=1 // pred_fallthru
      _
    %p16 = scmp.eq.s32.totalorder 0, 0
    // Predicated region
    $region14: #{tpu_custom_call.1} parent=1 // pred_check
      %p17 = pneg %p16
    $region15: #{tpu_custom_call.1} parent=1 // pred_check_branch
      %19 = sbr.rel (%p17) target = $region17
    $region16: #{tpu_custom_call.1} parent=1 // pred_region
      %20 = vst [vmem:[#allocation2] sm:$0xff] 0.0
      %21 = vst [vmem:[#allocation2 + $0x8] sm:$0xff] 0.0
      %22 = vst [vmem:[#allocation2 + $0x10] sm:$0xff] 0.0
      %23 = vst [vmem:[#allocation2 + $0x18] sm:$0xff] 0.0
      %24 = vst [vmem:[#allocation2 + $0x20] sm:$0xff] 0.0
      %25 = vst [vmem:[#allocation2 + $0x28] sm:$0xff] 0.0
      %26 = vst [vmem:[#allocation2 + $0x30] sm:$0xff] 0.0
      %27 = vst [vmem:[#allocation2 + $0x38] sm:$0xff] 0.0
      %28 = vst [vmem:[#allocation2 + $0x40] sm:$0xff] 0.0
      %29 = vst [vmem:[#allocation2 + $0x48] sm:$0xff] 0.0
      %30 = vst [vmem:[#allocation2 + $0x50] sm:$0xff] 0.0
      %31 = vst [vmem:[#allocation2 + $0x58] sm:$0xff] 0.0
      %32 = vst [vmem:[#allocation2 + $0x60] sm:$0xff] 0.0
      %33 = vst [vmem:[#allocation2 + $0x68] sm:$0xff] 0.0
      %34 = vst [vmem:[#allocation2 + $0x70] sm:$0xff] 0.0
      %35 = vst [vmem:[#allocation2 + $0x78] sm:$0xff] 0.0
      %36 = vst [vmem:[#allocation2 + $0x80] sm:$0xff] 0.0
      %37 = vst [vmem:[#allocation2 + $0x88] sm:$0xff] 0.0
      %38 = vst [vmem:[#allocation2 + $0x90] sm:$0xff] 0.0
      %39 = vst [vmem:[#allocation2 + $0x98] sm:$0xff] 0.0
      %40 = vst [vmem:[#allocation2 + $0xa0] sm:$0xff] 0.0
      %41 = vst [vmem:[#allocation2 + $0xa8] sm:$0xff] 0.0
      %42 = vst [vmem:[#allocation2 + $0xb0] sm:$0xff] 0.0
      %43 = vst [vmem:[#allocation2 + $0xb8] sm:$0xff] 0.0
      %44 = vst [vmem:[#allocation2 + $0xc0] sm:$0xff] 0.0
      %45 = vst [vmem:[#allocation2 + $0xc8] sm:$0xff] 0.0
      %46 = vst [vmem:[#allocation2 + $0xd0] sm:$0xff] 0.0
      %47 = vst [vmem:[#allocation2 + $0xd8] sm:$0xff] 0.0
      %48 = vst [vmem:[#allocation2 + $0xe0] sm:$0xff] 0.0
      %49 = vst [vmem:[#allocation2 + $0xe8] sm:$0xff] 0.0
      %50 = vst [vmem:[#allocation2 + $0xf0] sm:$0xff] 0.0
      %51 = vst [vmem:[#allocation2 + $0xf8] sm:$0xff] 0.0
      %52 = vst [vmem:[#allocation2 + $0x100] sm:$0xff] 0.0
      %53 = vst [vmem:[#allocation2 + $0x108] sm:$0xff] 0.0
      %54 = vst [vmem:[#allocation2 + $0x110] sm:$0xff] 0.0
      %55 = vst [vmem:[#allocation2 + $0x118] sm:$0xff] 0.0
      %56 = vst [vmem:[#allocation2 + $0x120] sm:$0xff] 0.0
      %57 = vst [vmem:[#allocation2 + $0x128] sm:$0xff] 0.0
      %58 = vst [vmem:[#allocation2 + $0x130] sm:$0xff] 0.0
      %59 = vst [vmem:[#allocation2 + $0x138] sm:$0xff] 0.0
      %60 = vst [vmem:[#allocation2 + $0x140] sm:$0xff] 0.0
      %61 = vst [vmem:[#allocation2 + $0x148] sm:$0xff] 0.0
      %62 = vst [vmem:[#allocation2 + $0x150] sm:$0xff] 0.0
      %63 = vst [vmem:[#allocation2 + $0x158] sm:$0xff] 0.0
      %64 = vst [vmem:[#allocation2 + $0x160] sm:$0xff] 0.0
      %65 = vst [vmem:[#allocation2 + $0x168] sm:$0xff] 0.0
      %66 = vst [vmem:[#allocation2 + $0x170] sm:$0xff] 0.0
      %67 = vst [vmem:[#allocation2 + $0x178] sm:$0xff] 0.0
      %68 = vst [vmem:[#allocation2 + $0x180] sm:$0xff] 0.0
      %69 = vst [vmem:[#allocation2 + $0x188] sm:$0xff] 0.0
      %70 = vst [vmem:[#allocation2 + $0x190] sm:$0xff] 0.0
      %71 = vst [vmem:[#allocation2 + $0x198] sm:$0xff] 0.0
      %72 = vst [vmem:[#allocation2 + $0x1a0] sm:$0xff] 0.0
      %73 = vst [vmem:[#allocation2 + $0x1a8] sm:$0xff] 0.0
      %74 = vst [vmem:[#allocation2 + $0x1b0] sm:$0xff] 0.0
      %75 = vst [vmem:[#allocation2 + $0x1b8] sm:$0xff] 0.0
      %76 = vst [vmem:[#allocation2 + $0x1c0] sm:$0xff] 0.0
      %77 = vst [vmem:[#allocation2 + $0x1c8] sm:$0xff] 0.0
      %78 = vst [vmem:[#allocation2 + $0x1d0] sm:$0xff] 0.0
      %79 = vst [vmem:[#allocation2 + $0x1d8] sm:$0xff] 0.0
      %80 = vst [vmem:[#allocation2 + $0x1e0] sm:$0xff] 0.0
      %81 = vst [vmem:[#allocation2 + $0x1e8] sm:$0xff] 0.0
      %82 = vst [vmem:[#allocation2 + $0x1f0] sm:$0xff] 0.0
      %83 = vst [vmem:[#allocation2 + $0x1f8] sm:$0xff] 0.0
    $region17: #{tpu_custom_call.1} parent=1 // pred_fallthru
      _
    %v84 = vld [vmem:[#allocation2] sm:$0xff]
    %v85 = vld [vmem:[#allocation2 + $0x8] sm:$0xff]
    %v86 = vld [vmem:[#allocation2 + $0x10] sm:$0xff]
    %v87 = vld [vmem:[#allocation2 + $0x18] sm:$0xff]
    %v88 = vld [vmem:[#allocation2 + $0x20] sm:$0xff]
    %v89 = vld [vmem:[#allocation2 + $0x28] sm:$0xff]
    %v90 = vld [vmem:[#allocation2 + $0x30] sm:$0xff]
    %v91 = vld [vmem:[#allocation2 + $0x38] sm:$0xff]
    %v92 = vld [vmem:[#allocation2 + $0x40] sm:$0xff]
    %v93 = vld [vmem:[#allocation2 + $0x48] sm:$0xff]
    %v94 = vld [vmem:[#allocation2 + $0x50] sm:$0xff]
    %v95 = vld [vmem:[#allocation2 + $0x58] sm:$0xff]
    %v96 = vld [vmem:[#allocation2 + $0x60] sm:$0xff]
    %v97 = vld [vmem:[#allocation2 + $0x68] sm:$0xff]
    %v98 = vld [vmem:[#allocation2 + $0x70] sm:$0xff]
    %v99 = vld [vmem:[#allocation2 + $0x78] sm:$0xff]
    %v100 = vld [vmem:[#allocation2 + $0x80] sm:$0xff]
    %v101 = vld [vmem:[#allocation2 + $0x88] sm:$0xff]
    %v102 = vld [vmem:[#allocation2 + $0x90] sm:$0xff]
    %v103 = vld [vmem:[#allocation2 + $0x98] sm:$0xff]
    %v104 = vld [vmem:[#allocation2 + $0xa0] sm:$0xff]
    %v105 = vld [vmem:[#allocation2 + $0xa8] sm:$0xff]
    %v106 = vld [vmem:[#allocation2 + $0xb0] sm:$0xff]
    %v107 = vld [vmem:[#allocation2 + $0xb8] sm:$0xff]
    %v108 = vld [vmem:[#allocation2 + $0xc0] sm:$0xff]
    %v109 = vld [vmem:[#allocation2 + $0xc8] sm:$0xff]
    %v110 = vld [vmem:[#allocation2 + $0xd0] sm:$0xff]
    %v111 = vld [vmem:[#allocation2 + $0xd8] sm:$0xff]
    %v112 = vld [vmem:[#allocation2 + $0xe0] sm:$0xff]
    %v113 = vld [vmem:[#allocation2 + $0xe8] sm:$0xff]
    %v114 = vld [vmem:[#allocation2 + $0xf0] sm:$0xff]
    %v115 = vld [vmem:[#allocation2 + $0xf8] sm:$0xff]
    %v116 = vld [vmem:[#allocation2 + $0x100] sm:$0xff]
    %v117 = vld [vmem:[#allocation2 + $0x108] sm:$0xff]
    %v118 = vld [vmem:[#allocation2 + $0x110] sm:$0xff]
    %v119 = vld [vmem:[#allocation2 + $0x118] sm:$0xff]
    %v120 = vld [vmem:[#allocation2 + $0x120] sm:$0xff]
    %v121 = vld [vmem:[#allocation2 + $0x128] sm:$0xff]
    %v122 = vld [vmem:[#allocation2 + $0x130] sm:$0xff]
    %v123 = vld [vmem:[#allocation2 + $0x138] sm:$0xff]
    %v124 = vld [vmem:[#allocation2 + $0x140] sm:$0xff]
    %v125 = vld [vmem:[#allocation2 + $0x148] sm:$0xff]
    %v126 = vld [vmem:[#allocation2 + $0x150] sm:$0xff]
    %v127 = vld [vmem:[#allocation2 + $0x158] sm:$0xff]
    %v128 = vld [vmem:[#allocation2 + $0x160] sm:$0xff]
    %v129 = vld [vmem:[#allocation2 + $0x168] sm:$0xff]
    %v130 = vld [vmem:[#allocation2 + $0x170] sm:$0xff]
    %v131 = vld [vmem:[#allocation2 + $0x178] sm:$0xff]
    %v132 = vld [vmem:[#allocation2 + $0x180] sm:$0xff]
    %v133 = vld [vmem:[#allocation2 + $0x188] sm:$0xff]
    %v134 = vld [vmem:[#allocation2 + $0x190] sm:$0xff]
    %v135 = vld [vmem:[#allocation2 + $0x198] sm:$0xff]
    %v136 = vld [vmem:[#allocation2 + $0x1a0] sm:$0xff]
    %v137 = vld [vmem:[#allocation2 + $0x1a8] sm:$0xff]
    %v138 = vld [vmem:[#allocation2 + $0x1b0] sm:$0xff]
    %v139 = vld [vmem:[#allocation2 + $0x1b8] sm:$0xff]
    %v140 = vld [vmem:[#allocation2 + $0x1c0] sm:$0xff]
    %v141 = vld [vmem:[#allocation2 + $0x1c8] sm:$0xff]
    %v142 = vld [vmem:[#allocation2 + $0x1d0] sm:$0xff]
    %v143 = vld [vmem:[#allocation2 + $0x1d8] sm:$0xff]
    %v144 = vld [vmem:[#allocation2 + $0x1e0] sm:$0xff]
    %v145 = vld [vmem:[#allocation2 + $0x1e8] sm:$0xff]
    %v146 = vld [vmem:[#allocation2 + $0x1f0] sm:$0xff]
    %v147 = vld [vmem:[#allocation2 + $0x1f8] sm:$0xff]
    %v148 = vld [vmem:[%s0] sm:$0xff]
    %v149 = vld [vmem:[%s0 + $0x8] sm:$0xff]
    %v150 = vld [vmem:[%s0 + $0x10] sm:$0xff]
    %v151 = vld [vmem:[%s0 + $0x18] sm:$0xff]
    %v152 = vld [vmem:[%s0 + $0x20] sm:$0xff]
    %v153 = vld [vmem:[%s0 + $0x28] sm:$0xff]
    %v154 = vld [vmem:[%s0 + $0x30] sm:$0xff]
    %v155 = vld [vmem:[%s0 + $0x38] sm:$0xff]
    %v156 = vld [vmem:[%s0 + $0x40] sm:$0xff]
    %v157 = vld [vmem:[%s0 + $0x48] sm:$0xff]
    %v158 = vld [vmem:[%s0 + $0x50] sm:$0xff]
    %v159 = vld [vmem:[%s0 + $0x58] sm:$0xff]
    %v160 = vld [vmem:[%s0 + $0x60] sm:$0xff]
    %v161 = vld [vmem:[%s0 + $0x68] sm:$0xff]
    %v162 = vld [vmem:[%s0 + $0x70] sm:$0xff]
    %v163 = vld [vmem:[%s0 + $0x78] sm:$0xff]
    %v164 = vld [vmem:[%s0 + $0x80] sm:$0xff]
    %v165 = vld [vmem:[%s0 + $0x88] sm:$0xff]
    %v166 = vld [vmem:[%s0 + $0x90] sm:$0xff]
    %v167 = vld [vmem:[%s0 + $0x98] sm:$0xff]
    %v168 = vld [vmem:[%s0 + $0xa0] sm:$0xff]
    %v169 = vld [vmem:[%s0 + $0xa8] sm:$0xff]
    %v170 = vld [vmem:[%s0 + $0xb0] sm:$0xff]
    %v171 = vld [vmem:[%s0 + $0xb8] sm:$0xff]
    %v172 = vld [vmem:[%s0 + $0xc0] sm:$0xff]
    %v173 = vld [vmem:[%s0 + $0xc8] sm:$0xff]
    %v174 = vld [vmem:[%s0 + $0xd0] sm:$0xff]
    %v175 = vld [vmem:[%s0 + $0xd8] sm:$0xff]
    %v176 = vld [vmem:[%s0 + $0xe0] sm:$0xff]
    %v177 = vld [vmem:[%s0 + $0xe8] sm:$0xff]
    %v178 = vld [vmem:[%s0 + $0xf0] sm:$0xff]
    %v179 = vld [vmem:[%s0 + $0xf8] sm:$0xff]
    %v180 = vld [vmem:[%s0 + $0x100] sm:$0xff]
    %v181 = vld [vmem:[%s0 + $0x108] sm:$0xff]
    %v182 = vld [vmem:[%s0 + $0x110] sm:$0xff]
    %v183 = vld [vmem:[%s0 + $0x118] sm:$0xff]
    %v184 = vld [vmem:[%s0 + $0x120] sm:$0xff]
    %v185 = vld [vmem:[%s0 + $0x128] sm:$0xff]
    %v186 = vld [vmem:[%s0 + $0x130] sm:$0xff]
    %v187 = vld [vmem:[%s0 + $0x138] sm:$0xff]
    %v188 = vld [vmem:[%s0 + $0x140] sm:$0xff]
    %v189 = vld [vmem:[%s0 + $0x148] sm:$0xff]
    %v190 = vld [vmem:[%s0 + $0x150] sm:$0xff]
    %v191 = vld [vmem:[%s0 + $0x158] sm:$0xff]
    %v192 = vld [vmem:[%s0 + $0x160] sm:$0xff]
    %v193 = vld [vmem:[%s0 + $0x168] sm:$0xff]
    %v194 = vld [vmem:[%s0 + $0x170] sm:$0xff]
    %v195 = vld [vmem:[%s0 + $0x178] sm:$0xff]
    %v196 = vld [vmem:[%s0 + $0x180] sm:$0xff]
    %v197 = vld [vmem:[%s0 + $0x188] sm:$0xff]
    %v198 = vld [vmem:[%s0 + $0x190] sm:$0xff]
    %v199 = vld [vmem:[%s0 + $0x198] sm:$0xff]
    %v200 = vld [vmem:[%s0 + $0x1a0] sm:$0xff]
    %v201 = vld [vmem:[%s0 + $0x1a8] sm:$0xff]
    %v202 = vld [vmem:[%s0 + $0x1b0] sm:$0xff]
    %v203 = vld [vmem:[%s0 + $0x1b8] sm:$0xff]
    %v204 = vld [vmem:[%s0 + $0x1c0] sm:$0xff]
    %v205 = vld [vmem:[%s0 + $0x1c8] sm:$0xff]
    %v206 = vld [vmem:[%s0 + $0x1d0] sm:$0xff]
    %v207 = vld [vmem:[%s0 + $0x1d8] sm:$0xff]
    %v208 = vld [vmem:[%s0 + $0x1e0] sm:$0xff]
    %v209 = vld [vmem:[%s0 + $0x1e8] sm:$0xff]
    %v210 = vld [vmem:[%s0 + $0x1f0] sm:$0xff]
    %v211 = vld [vmem:[%s0 + $0x1f8] sm:$0xff]
    %v212 = vld [vmem:[%s0 + $0x200] sm:$0xff]
    %v213 = vld [vmem:[%s0 + $0x208] sm:$0xff]
    %v214 = vld [vmem:[%s0 + $0x210] sm:$0xff]
    %v215 = vld [vmem:[%s0 + $0x218] sm:$0xff]
    %v216 = vld [vmem:[%s0 + $0x220] sm:$0xff]
    %v217 = vld [vmem:[%s0 + $0x228] sm:$0xff]
    %v218 = vld [vmem:[%s0 + $0x230] sm:$0xff]
    %v219 = vld [vmem:[%s0 + $0x238] sm:$0xff]
    %v220 = vld [vmem:[%s0 + $0x240] sm:$0xff]
    %v221 = vld [vmem:[%s0 + $0x248] sm:$0xff]
    %v222 = vld [vmem:[%s0 + $0x250] sm:$0xff]
    %v223 = vld [vmem:[%s0 + $0x258] sm:$0xff]
    %v224 = vld [vmem:[%s0 + $0x260] sm:$0xff]
    %v225 = vld [vmem:[%s0 + $0x268] sm:$0xff]
    %v226 = vld [vmem:[%s0 + $0x270] sm:$0xff]
    %v227 = vld [vmem:[%s0 + $0x278] sm:$0xff]
    %v228 = vld [vmem:[%s0 + $0x280] sm:$0xff]
    %v229 = vld [vmem:[%s0 + $0x288] sm:$0xff]
    %v230 = vld [vmem:[%s0 + $0x290] sm:$0xff]
    %v231 = vld [vmem:[%s0 + $0x298] sm:$0xff]
    %v232 = vld [vmem:[%s0 + $0x2a0] sm:$0xff]
    %v233 = vld [vmem:[%s0 + $0x2a8] sm:$0xff]
    %v234 = vld [vmem:[%s0 + $0x2b0] sm:$0xff]
    %v235 = vld [vmem:[%s0 + $0x2b8] sm:$0xff]
    %v236 = vld [vmem:[%s0 + $0x2c0] sm:$0xff]
    %v237 = vld [vmem:[%s0 + $0x2c8] sm:$0xff]
    %v238 = vld [vmem:[%s0 + $0x2d0] sm:$0xff]
    %v239 = vld [vmem:[%s0 + $0x2d8] sm:$0xff]
    %v240 = vld [vmem:[%s0 + $0x2e0] sm:$0xff]
    %v241 = vld [vmem:[%s0 + $0x2e8] sm:$0xff]
    %v242 = vld [vmem:[%s0 + $0x2f0] sm:$0xff]
    %v243 = vld [vmem:[%s0 + $0x2f8] sm:$0xff]
    %v244 = vld [vmem:[%s0 + $0x300] sm:$0xff]
    %v245 = vld [vmem:[%s0 + $0x308] sm:$0xff]
    %v246 = vld [vmem:[%s0 + $0x310] sm:$0xff]
    %v247 = vld [vmem:[%s0 + $0x318] sm:$0xff]
    %v248 = vld [vmem:[%s0 + $0x320] sm:$0xff]
    %v249 = vld [vmem:[%s0 + $0x328] sm:$0xff]
    %v250 = vld [vmem:[%s0 + $0x330] sm:$0xff]
    %v251 = vld [vmem:[%s0 + $0x338] sm:$0xff]
    %v252 = vld [vmem:[%s0 + $0x340] sm:$0xff]
    %v253 = vld [vmem:[%s0 + $0x348] sm:$0xff]
    %v254 = vld [vmem:[%s0 + $0x350] sm:$0xff]
    %v255 = vld [vmem:[%s0 + $0x358] sm:$0xff]
    %v256 = vld [vmem:[%s0 + $0x360] sm:$0xff]
    %v257 = vld [vmem:[%s0 + $0x368] sm:$0xff]
    %v258 = vld [vmem:[%s0 + $0x370] sm:$0xff]
    %v259 = vld [vmem:[%s0 + $0x378] sm:$0xff]
    %v260 = vld [vmem:[%s0 + $0x380] sm:$0xff]
    %v261 = vld [vmem:[%s0 + $0x388] sm:$0xff]
    %v262 = vld [vmem:[%s0 + $0x390] sm:$0xff]
    %v263 = vld [vmem:[%s0 + $0x398] sm:$0xff]
    %v264 = vld [vmem:[%s0 + $0x3a0] sm:$0xff]
    %v265 = vld [vmem:[%s0 + $0x3a8] sm:$0xff]
    %v266 = vld [vmem:[%s0 + $0x3b0] sm:$0xff]
    %v267 = vld [vmem:[%s0 + $0x3b8] sm:$0xff]
    %v268 = vld [vmem:[%s0 + $0x3c0] sm:$0xff]
    %v269 = vld [vmem:[%s0 + $0x3c8] sm:$0xff]
    %v270 = vld [vmem:[%s0 + $0x3d0] sm:$0xff]
    %v271 = vld [vmem:[%s0 + $0x3d8] sm:$0xff]
    %v272 = vld [vmem:[%s0 + $0x3e0] sm:$0xff]
    %v273 = vld [vmem:[%s0 + $0x3e8] sm:$0xff]
    %v274 = vld [vmem:[%s0 + $0x3f0] sm:$0xff]
    %v275 = vld [vmem:[%s0 + $0x3f8] sm:$0xff]
    %v276 = vld [vmem:[%s1] sm:$0xf]
    %v277 = vld [vmem:[%s1 + $0x4] sm:$0xf]
    %v278 = vld [vmem:[%s1 + $0x8] sm:$0xf]
    %v279 = vld [vmem:[%s1 + $0xc] sm:$0xf]
    %v280 = vld [vmem:[%s1 + $0x10] sm:$0xf]
    %v281 = vld [vmem:[%s1 + $0x14] sm:$0xf]
    %v282 = vld [vmem:[%s1 + $0x18] sm:$0xf]
    %v283 = vld [vmem:[%s1 + $0x1c] sm:$0xf]
    %v284 = vld [vmem:[%s1 + $0x20] sm:$0xf]
    %v285 = vld [vmem:[%s1 + $0x24] sm:$0xf]
    %v286 = vld [vmem:[%s1 + $0x28] sm:$0xf]
    %v287 = vld [vmem:[%s1 + $0x2c] sm:$0xf]
    %v288 = vld [vmem:[%s1 + $0x30] sm:$0xf]
    %v289 = vld [vmem:[%s1 + $0x34] sm:$0xf]
    %v290 = vld [vmem:[%s1 + $0x38] sm:$0xf]
    %v291 = vld [vmem:[%s1 + $0x3c] sm:$0xf]
    %v292 = vld [vmem:[%s1 + $0x40] sm:$0xf]
    %v293 = vld [vmem:[%s1 + $0x44] sm:$0xf]
    %v294 = vld [vmem:[%s1 + $0x48] sm:$0xf]
    %v295 = vld [vmem:[%s1 + $0x4c] sm:$0xf]
    %v296 = vld [vmem:[%s1 + $0x50] sm:$0xf]
    %v297 = vld [vmem:[%s1 + $0x54] sm:$0xf]
    %v298 = vld [vmem:[%s1 + $0x58] sm:$0xf]
    %v299 = vld [vmem:[%s1 + $0x5c] sm:$0xf]
    %v300 = vld [vmem:[%s1 + $0x60] sm:$0xf]
    %v301 = vld [vmem:[%s1 + $0x64] sm:$0xf]
    %v302 = vld [vmem:[%s1 + $0x68] sm:$0xf]
    %v303 = vld [vmem:[%s1 + $0x6c] sm:$0xf]
    %v304 = vld [vmem:[%s1 + $0x70] sm:$0xf]
    %v305 = vld [vmem:[%s1 + $0x74] sm:$0xf]
    %v306 = vld [vmem:[%s1 + $0x78] sm:$0xf]
    %v307 = vld [vmem:[%s1 + $0x7c] sm:$0xf]
    %v308 = vld [vmem:[%s1 + $0x80] sm:$0xf]
    %v309 = vld [vmem:[%s1 + $0x84] sm:$0xf]
    %v310 = vld [vmem:[%s1 + $0x88] sm:$0xf]
    %v311 = vld [vmem:[%s1 + $0x8c] sm:$0xf]
    %v312 = vld [vmem:[%s1 + $0x90] sm:$0xf]
    %v313 = vld [vmem:[%s1 + $0x94] sm:$0xf]
    %v314 = vld [vmem:[%s1 + $0x98] sm:$0xf]
    %v315 = vld [vmem:[%s1 + $0x9c] sm:$0xf]
    %v316 = vld [vmem:[%s1 + $0xa0] sm:$0xf]
    %v317 = vld [vmem:[%s1 + $0xa4] sm:$0xf]
    %v318 = vld [vmem:[%s1 + $0xa8] sm:$0xf]
    %v319 = vld [vmem:[%s1 + $0xac] sm:$0xf]
    %v320 = vld [vmem:[%s1 + $0xb0] sm:$0xf]
    %v321 = vld [vmem:[%s1 + $0xb4] sm:$0xf]
    %v322 = vld [vmem:[%s1 + $0xb8] sm:$0xf]
    %v323 = vld [vmem:[%s1 + $0xbc] sm:$0xf]
    %v324 = vld [vmem:[%s1 + $0xc0] sm:$0xf]
    %v453 = vunpack.c.l.b16 %v148
    %v454 = vunpack.c.h.b16 %v148
    %v455 = vunpack.c.l.b16 %v149
    %v456 = vunpack.c.h.b16 %v149
    %v457 = vunpack.c.l.b16 %v150
    %v458 = vunpack.c.h.b16 %v150
    %v459 = vunpack.c.l.b16 %v151
    %v460 = vunpack.c.h.b16 %v151
    %v461 = vunpack.c.l.b16 %v152
    %v462 = vunpack.c.h.b16 %v152
    %v463 = vunpack.c.l.b16 %v153
    %v464 = vunpack.c.h.b16 %v153
    %v465 = vunpack.c.l.b16 %v154
    %v466 = vunpack.c.h.b16 %v154
    %v467 = vunpack.c.l.b16 %v155
    %v468 = vunpack.c.h.b16 %v155
    %v469 = vunpack.c.l.b16 %v156
    %v470 = vunpack.c.h.b16 %v156
    %v471 = vunpack.c.l.b16 %v157
    %v472 = vunpack.c.h.b16 %v157
    %v473 = vunpack.c.l.b16 %v158
    %v474 = vunpack.c.h.b16 %v158
    %v475 = vunpack.c.l.b16 %v159
    %v476 = vunpack.c.h.b16 %v159
    %v477 = vunpack.c.l.b16 %v160
    %v478 = vunpack.c.h.b16 %v160
    %v479 = vunpack.c.l.b16 %v161
    %v480 = vunpack.c.h.b16 %v161
    %v481 = vunpack.c.l.b16 %v162
    %v482 = vunpack.c.h.b16 %v162
    %v483 = vunpack.c.l.b16 %v163
    %v484 = vunpack.c.h.b16 %v163
    %v485 = vunpack.c.l.b16 %v164
    %v486 = vunpack.c.h.b16 %v164
    %v487 = vunpack.c.l.b16 %v165
    %v488 = vunpack.c.h.b16 %v165
    %v489 = vunpack.c.l.b16 %v166
    %v490 = vunpack.c.h.b16 %v166
    %v491 = vunpack.c.l.b16 %v167
    %v492 = vunpack.c.h.b16 %v167
    %v493 = vunpack.c.l.b16 %v168
    %v494 = vunpack.c.h.b16 %v168
    %v495 = vunpack.c.l.b16 %v169
    %v496 = vunpack.c.h.b16 %v169
    %v497 = vunpack.c.l.b16 %v170
    %v498 = vunpack.c.h.b16 %v170
    %v499 = vunpack.c.l.b16 %v171
    %v500 = vunpack.c.h.b16 %v171
    %v501 = vunpack.c.l.b16 %v172
    %v502 = vunpack.c.h.b16 %v172
    %v503 = vunpack.c.l.b16 %v173
    %v504 = vunpack.c.h.b16 %v173
    %v505 = vunpack.c.l.b16 %v174
    %v506 = vunpack.c.h.b16 %v174
    %v507 = vunpack.c.l.b16 %v175
    %v508 = vunpack.c.h.b16 %v175
    %v509 = vunpack.c.l.b16 %v176
    %v510 = vunpack.c.h.b16 %v176
    %v511 = vunpack.c.l.b16 %v177
    %v512 = vunpack.c.h.b16 %v177
    %v513 = vunpack.c.l.b16 %v178
    %v514 = vunpack.c.h.b16 %v178
    %v515 = vunpack.c.l.b16 %v179
    %v516 = vunpack.c.h.b16 %v179
    %v517 = vunpack.c.l.b16 %v180
    %v518 = vunpack.c.h.b16 %v180
    %v519 = vunpack.c.l.b16 %v181
    %v520 = vunpack.c.h.b16 %v181
    %v521 = vunpack.c.l.b16 %v182
    %v522 = vunpack.c.h.b16 %v182
    %v523 = vunpack.c.l.b16 %v183
    %v524 = vunpack.c.h.b16 %v183
    %v525 = vunpack.c.l.b16 %v184
    %v526 = vunpack.c.h.b16 %v184
    %v527 = vunpack.c.l.b16 %v185
    %v528 = vunpack.c.h.b16 %v185
    %v529 = vunpack.c.l.b16 %v186
    %v530 = vunpack.c.h.b16 %v186
    %v531 = vunpack.c.l.b16 %v187
    %v532 = vunpack.c.h.b16 %v187
    %v533 = vunpack.c.l.b16 %v188
    %v534 = vunpack.c.h.b16 %v188
    %v535 = vunpack.c.l.b16 %v189
    %v536 = vunpack.c.h.b16 %v189
    %v537 = vunpack.c.l.b16 %v190
    %v538 = vunpack.c.h.b16 %v190
    %v539 = vunpack.c.l.b16 %v191
    %v540 = vunpack.c.h.b16 %v191
    %v541 = vunpack.c.l.b16 %v192
    %v542 = vunpack.c.h.b16 %v192
    %v543 = vunpack.c.l.b16 %v193
    %v544 = vunpack.c.h.b16 %v193
    %v545 = vunpack.c.l.b16 %v194
    %v546 = vunpack.c.h.b16 %v194
    %v547 = vunpack.c.l.b16 %v195
    %v548 = vunpack.c.h.b16 %v195
    %v549 = vunpack.c.l.b16 %v196
    %v550 = vunpack.c.h.b16 %v196
    %v551 = vunpack.c.l.b16 %v197
    %v552 = vunpack.c.h.b16 %v197
    %v553 = vunpack.c.l.b16 %v198
    %v554 = vunpack.c.h.b16 %v198
    %v555 = vunpack.c.l.b16 %v199
    %v556 = vunpack.c.h.b16 %v199
    %v557 = vunpack.c.l.b16 %v200
    %v558 = vunpack.c.h.b16 %v200
    %v559 = vunpack.c.l.b16 %v201
    %v560 = vunpack.c.h.b16 %v201
    %v561 = vunpack.c.l.b16 %v202
    %v562 = vunpack.c.h.b16 %v202
    %v563 = vunpack.c.l.b16 %v203
    %v564 = vunpack.c.h.b16 %v203
    %v565 = vunpack.c.l.b16 %v204
    %v566 = vunpack.c.h.b16 %v204
    %v567 = vunpack.c.l.b16 %v205
    %v568 = vunpack.c.h.b16 %v205
    %v569 = vunpack.c.l.b16 %v206
    %v570 = vunpack.c.h.b16 %v206
    %v571 = vunpack.c.l.b16 %v207
    %v572 = vunpack.c.h.b16 %v207
    %v573 = vunpack.c.l.b16 %v208
    %v574 = vunpack.c.h.b16 %v208
    %v575 = vunpack.c.l.b16 %v209
    %v576 = vunpack.c.h.b16 %v209
    %v577 = vunpack.c.l.b16 %v210
    %v578 = vunpack.c.h.b16 %v210
    %v579 = vunpack.c.l.b16 %v211
    %v580 = vunpack.c.h.b16 %v211
    %v581 = vunpack.c.l.b16 %v212
    %v582 = vunpack.c.h.b16 %v212
    %v583 = vunpack.c.l.b16 %v213
    %v584 = vunpack.c.h.b16 %v213
    %v585 = vunpack.c.l.b16 %v214
    %v586 = vunpack.c.h.b16 %v214
    %v587 = vunpack.c.l.b16 %v215
    %v588 = vunpack.c.h.b16 %v215
    %v589 = vunpack.c.l.b16 %v216
    %v590 = vunpack.c.h.b16 %v216
    %v591 = vunpack.c.l.b16 %v217
    %v592 = vunpack.c.h.b16 %v217
    %v593 = vunpack.c.l.b16 %v218
    %v594 = vunpack.c.h.b16 %v218
    %v595 = vunpack.c.l.b16 %v219
    %v596 = vunpack.c.h.b16 %v219
    %v597 = vunpack.c.l.b16 %v220
    %v598 = vunpack.c.h.b16 %v220
    %v599 = vunpack.c.l.b16 %v221
    %v600 = vunpack.c.h.b16 %v221
    %v601 = vunpack.c.l.b16 %v222
    %v602 = vunpack.c.h.b16 %v222
    %v603 = vunpack.c.l.b16 %v223
    %v604 = vunpack.c.h.b16 %v223
    %v605 = vunpack.c.l.b16 %v224
    %v606 = vunpack.c.h.b16 %v224
    %v607 = vunpack.c.l.b16 %v225
    %v608 = vunpack.c.h.b16 %v225
    %v609 = vunpack.c.l.b16 %v226
    %v610 = vunpack.c.h.b16 %v226
    %v611 = vunpack.c.l.b16 %v227
    %v612 = vunpack.c.h.b16 %v227
    %v613 = vunpack.c.l.b16 %v228
    %v614 = vunpack.c.h.b16 %v228
    %v615 = vunpack.c.l.b16 %v229
    %v616 = vunpack.c.h.b16 %v229
    %v617 = vunpack.c.l.b16 %v230
    %v618 = vunpack.c.h.b16 %v230
    %v619 = vunpack.c.l.b16 %v231
    %v620 = vunpack.c.h.b16 %v231
    %v621 = vunpack.c.l.b16 %v232
    %v622 = vunpack.c.h.b16 %v232
    %v623 = vunpack.c.l.b16 %v233
    %v624 = vunpack.c.h.b16 %v233
    %v625 = vunpack.c.l.b16 %v234
    %v626 = vunpack.c.h.b16 %v234
    %v627 = vunpack.c.l.b16 %v235
    %v628 = vunpack.c.h.b16 %v235
    %v629 = vunpack.c.l.b16 %v236
    %v630 = vunpack.c.h.b16 %v236
    %v631 = vunpack.c.l.b16 %v237
    %v632 = vunpack.c.h.b16 %v237
    %v633 = vunpack.c.l.b16 %v238
    %v634 = vunpack.c.h.b16 %v238
    %v635 = vunpack.c.l.b16 %v239
    %v636 = vunpack.c.h.b16 %v239
    %v637 = vunpack.c.l.b16 %v240
    %v638 = vunpack.c.h.b16 %v240
    %v639 = vunpack.c.l.b16 %v241
    %v640 = vunpack.c.h.b16 %v241
    %v641 = vunpack.c.l.b16 %v242
    %v642 = vunpack.c.h.b16 %v242
    %v643 = vunpack.c.l.b16 %v243
    %v644 = vunpack.c.h.b16 %v243
    %v645 = vunpack.c.l.b16 %v244
    %v646 = vunpack.c.h.b16 %v244
    %v647 = vunpack.c.l.b16 %v245
    %v648 = vunpack.c.h.b16 %v245
    %v649 = vunpack.c.l.b16 %v246
    %v650 = vunpack.c.h.b16 %v246
    %v651 = vunpack.c.l.b16 %v247
    %v652 = vunpack.c.h.b16 %v247
    %v653 = vunpack.c.l.b16 %v248
    %v654 = vunpack.c.h.b16 %v248
    %v655 = vunpack.c.l.b16 %v249
    %v656 = vunpack.c.h.b16 %v249
    %v657 = vunpack.c.l.b16 %v250
    %v658 = vunpack.c.h.b16 %v250
    %v659 = vunpack.c.l.b16 %v251
    %v660 = vunpack.c.h.b16 %v251
    %v661 = vunpack.c.l.b16 %v252
    %v662 = vunpack.c.h.b16 %v252
    %v663 = vunpack.c.l.b16 %v253
    %v664 = vunpack.c.h.b16 %v253
    %v665 = vunpack.c.l.b16 %v254
    %v666 = vunpack.c.h.b16 %v254
    %v667 = vunpack.c.l.b16 %v255
    %v668 = vunpack.c.h.b16 %v255
    %v669 = vunpack.c.l.b16 %v256
    %v670 = vunpack.c.h.b16 %v256
    %v671 = vunpack.c.l.b16 %v257
    %v672 = vunpack.c.h.b16 %v257
    %v673 = vunpack.c.l.b16 %v258
    %v674 = vunpack.c.h.b16 %v258
    %v675 = vunpack.c.l.b16 %v259
    %v676 = vunpack.c.h.b16 %v259
    %v677 = vunpack.c.l.b16 %v260
    %v678 = vunpack.c.h.b16 %v260
    %v679 = vunpack.c.l.b16 %v261
    %v680 = vunpack.c.h.b16 %v261
    %v681 = vunpack.c.l.b16 %v262
    %v682 = vunpack.c.h.b16 %v262
    %v683 = vunpack.c.l.b16 %v263
    %v684 = vunpack.c.h.b16 %v263
    %v685 = vunpack.c.l.b16 %v264
    %v686 = vunpack.c.h.b16 %v264
    %v687 = vunpack.c.l.b16 %v265
    %v688 = vunpack.c.h.b16 %v265
    %v689 = vunpack.c.l.b16 %v266
    %v690 = vunpack.c.h.b16 %v266
    %v691 = vunpack.c.l.b16 %v267
    %v692 = vunpack.c.h.b16 %v267
    %v693 = vunpack.c.l.b16 %v268
    %v694 = vunpack.c.h.b16 %v268
    %v695 = vunpack.c.l.b16 %v269
    %v696 = vunpack.c.h.b16 %v269
    %v697 = vunpack.c.l.b16 %v270
    %v698 = vunpack.c.h.b16 %v270
    %v699 = vunpack.c.l.b16 %v271
    %v700 = vunpack.c.h.b16 %v271
    %v701 = vunpack.c.l.b16 %v272
    %v702 = vunpack.c.h.b16 %v272
    %v703 = vunpack.c.l.b16 %v273
    %v704 = vunpack.c.h.b16 %v273
    %v705 = vunpack.c.l.b16 %v274
    %v706 = vunpack.c.h.b16 %v274
    %v707 = vunpack.c.l.b16 %v275
    %v708 = vunpack.c.h.b16 %v275
    %v709 = vpack.c.b16 %v457, %v453
    %v710 = vpack.c.b16 %v458, %v454
    %v711 = vpack.c.b16 %v459, %v455
    %v712 = vpack.c.b16 %v460, %v456
    %v713 = vpack.c.b16 %v465, %v461
    %v714 = vpack.c.b16 %v466, %v462
    %v715 = vpack.c.b16 %v467, %v463
    %v716 = vpack.c.b16 %v468, %v464
    %v717 = vpack.c.b16 %v473, %v469
    %v718 = vpack.c.b16 %v474, %v470
    %v719 = vpack.c.b16 %v475, %v471
    %v720 = vpack.c.b16 %v476, %v472
    %v721 = vpack.c.b16 %v481, %v477
    %v722 = vpack.c.b16 %v482, %v478
    %v723 = vpack.c.b16 %v483, %v479
    %v724 = vpack.c.b16 %v484, %v480
    %v725 = vpack.c.b16 %v489, %v485
    %v726 = vpack.c.b16 %v490, %v486
    %v727 = vpack.c.b16 %v491, %v487
    %v728 = vpack.c.b16 %v492, %v488
    %v729 = vpack.c.b16 %v497, %v493
    %v730 = vpack.c.b16 %v498, %v494
    %v731 = vpack.c.b16 %v499, %v495
    %v732 = vpack.c.b16 %v500, %v496
    %v733 = vpack.c.b16 %v505, %v501
    %v734 = vpack.c.b16 %v506, %v502
    %v735 = vpack.c.b16 %v507, %v503
    %v736 = vpack.c.b16 %v508, %v504
    %v737 = vpack.c.b16 %v513, %v509
    %v738 = vpack.c.b16 %v514, %v510
    %v739 = vpack.c.b16 %v515, %v511
    %v740 = vpack.c.b16 %v516, %v512
    %v741 = vpack.c.b16 %v521, %v517
    %v742 = vpack.c.b16 %v522, %v518
    %v743 = vpack.c.b16 %v523, %v519
    %v744 = vpack.c.b16 %v524, %v520
    %v745 = vpack.c.b16 %v529, %v525
    %v746 = vpack.c.b16 %v530, %v526
    %v747 = vpack.c.b16 %v531, %v527
    %v748 = vpack.c.b16 %v532, %v528
    %v749 = vpack.c.b16 %v537, %v533
    %v750 = vpack.c.b16 %v538, %v534
    %v751 = vpack.c.b16 %v539, %v535
    %v752 = vpack.c.b16 %v540, %v536
    %v753 = vpack.c.b16 %v545, %v541
    %v754 = vpack.c.b16 %v546, %v542
    %v755 = vpack.c.b16 %v547, %v543
    %v756 = vpack.c.b16 %v548, %v544
    %v757 = vpack.c.b16 %v553, %v549
    %v758 = vpack.c.b16 %v554, %v550
    %v759 = vpack.c.b16 %v555, %v551
    %v760 = vpack.c.b16 %v556, %v552
    %v761 = vpack.c.b16 %v561, %v557
    %v762 = vpack.c.b16 %v562, %v558
    %v763 = vpack.c.b16 %v563, %v559
    %v764 = vpack.c.b16 %v564, %v560
    %v765 = vpack.c.b16 %v569, %v565
    %v766 = vpack.c.b16 %v570, %v566
    %v767 = vpack.c.b16 %v571, %v567
    %v768 = vpack.c.b16 %v572, %v568
    %v769 = vpack.c.b16 %v577, %v573
    %v770 = vpack.c.b16 %v578, %v574
    %v771 = vpack.c.b16 %v579, %v575
    %v772 = vpack.c.b16 %v580, %v576
    %v773 = vpack.c.b16 %v585, %v581
    %v774 = vpack.c.b16 %v586, %v582
    %v775 = vpack.c.b16 %v587, %v583
    %v776 = vpack.c.b16 %v588, %v584
    %v777 = vpack.c.b16 %v593, %v589
    %v778 = vpack.c.b16 %v594, %v590
    %v779 = vpack.c.b16 %v595, %v591
    %v780 = vpack.c.b16 %v596, %v592
    %v781 = vpack.c.b16 %v601, %v597
    %v782 = vpack.c.b16 %v602, %v598
    %v783 = vpack.c.b16 %v603, %v599
    %v784 = vpack.c.b16 %v604, %v600
    %v785 = vpack.c.b16 %v609, %v605
    %v786 = vpack.c.b16 %v610, %v606
    %v787 = vpack.c.b16 %v611, %v607
    %v788 = vpack.c.b16 %v612, %v608
    %v789 = vpack.c.b16 %v617, %v613
    %v790 = vpack.c.b16 %v618, %v614
    %v791 = vpack.c.b16 %v619, %v615
    %v792 = vpack.c.b16 %v620, %v616
    %v793 = vpack.c.b16 %v625, %v621
    %v794 = vpack.c.b16 %v626, %v622
    %v795 = vpack.c.b16 %v627, %v623
    %v796 = vpack.c.b16 %v628, %v624
    %v797 = vpack.c.b16 %v633, %v629
    %v798 = vpack.c.b16 %v634, %v630
    %v799 = vpack.c.b16 %v635, %v631
    %v800 = vpack.c.b16 %v636, %v632
    %v801 = vpack.c.b16 %v641, %v637
    %v802 = vpack.c.b16 %v642, %v638
    %v803 = vpack.c.b16 %v643, %v639
    %v804 = vpack.c.b16 %v644, %v640
    %v805 = vpack.c.b16 %v649, %v645
    %v806 = vpack.c.b16 %v650, %v646
    %v807 = vpack.c.b16 %v651, %v647
    %v808 = vpack.c.b16 %v652, %v648
    %v809 = vpack.c.b16 %v657, %v653
    %v810 = vpack.c.b16 %v658, %v654
    %v811 = vpack.c.b16 %v659, %v655
    %v812 = vpack.c.b16 %v660, %v656
    %v813 = vpack.c.b16 %v665, %v661
    %v814 = vpack.c.b16 %v666, %v662
    %v815 = vpack.c.b16 %v667, %v663
    %v816 = vpack.c.b16 %v668, %v664
    %v817 = vpack.c.b16 %v673, %v669
    %v818 = vpack.c.b16 %v674, %v670
    %v819 = vpack.c.b16 %v675, %v671
    %v820 = vpack.c.b16 %v676, %v672
    %v821 = vpack.c.b16 %v681, %v677
    %v822 = vpack.c.b16 %v682, %v678
    %v823 = vpack.c.b16 %v683, %v679
    %v824 = vpack.c.b16 %v684, %v680
    %v825 = vpack.c.b16 %v689, %v685
    %v826 = vpack.c.b16 %v690, %v686
    %v827 = vpack.c.b16 %v691, %v687
    %v828 = vpack.c.b16 %v692, %v688
    %v829 = vpack.c.b16 %v697, %v693
    %v830 = vpack.c.b16 %v698, %v694
    %v831 = vpack.c.b16 %v699, %v695
    %v832 = vpack.c.b16 %v700, %v696
    %v833 = vpack.c.b16 %v705, %v701
    %v834 = vpack.c.b16 %v706, %v702
    %v835 = vpack.c.b16 %v707, %v703
    %v836 = vpack.c.b16 %v708, %v704
    %v982 = vunpack.c.l.b16 %v276
    %v983 = vunpack.c.l.b16 %v277
    %v984 = vunpack.c.l.b16 %v278
    %v985 = vunpack.c.l.b16 %v279
    %v986 = vunpack.c.l.b16 %v280
    %v987 = vunpack.c.l.b16 %v281
    %v988 = vunpack.c.l.b16 %v282
    %v989 = vunpack.c.l.b16 %v283
    %v990 = vunpack.c.l.b16 %v284
    %v991 = vunpack.c.l.b16 %v285
    %v992 = vunpack.c.l.b16 %v286
    %v993 = vunpack.c.l.b16 %v287
    %v994 = vunpack.c.l.b16 %v288
    %v995 = vunpack.c.l.b16 %v289
    %v996 = vunpack.c.l.b16 %v290
    %v997 = vunpack.c.l.b16 %v291
    %v998 = vunpack.c.l.b16 %v292
    %v999 = vunpack.c.l.b16 %v293
    %v1000 = vunpack.c.l.b16 %v294
    %v1001 = vunpack.c.l.b16 %v295
    %v1002 = vunpack.c.l.b16 %v296
    %v1003 = vunpack.c.l.b16 %v297
    %v1004 = vunpack.c.l.b16 %v298
    %v1005 = vunpack.c.l.b16 %v299
    %v1006 = vunpack.c.l.b16 %v300
    %v1007 = vunpack.c.l.b16 %v301
    %v1008 = vunpack.c.l.b16 %v302
    %v1009 = vunpack.c.l.b16 %v303
    %v1010 = vunpack.c.l.b16 %v304
    %v1011 = vunpack.c.l.b16 %v305
    %v1012 = vunpack.c.l.b16 %v306
    %v1013 = vunpack.c.l.b16 %v307
    %v1014 = vunpack.c.l.b16 %v308
    %v1015 = vunpack.c.l.b16 %v309
    %v1016 = vunpack.c.l.b16 %v310
    %v1017 = vunpack.c.l.b16 %v311
    %v1018 = vunpack.c.l.b16 %v312
    %v1019 = vunpack.c.l.b16 %v313
    %v1020 = vunpack.c.l.b16 %v314
    %v1021 = vunpack.c.l.b16 %v315
    %v1022 = vunpack.c.l.b16 %v316
    %v1023 = vunpack.c.l.b16 %v317
    %v1024 = vunpack.c.l.b16 %v318
    %v1025 = vunpack.c.l.b16 %v319
    %v1026 = vunpack.c.l.b16 %v320
    %v1027 = vunpack.c.l.b16 %v321
    %v1028 = vunpack.c.l.b16 %v322
    %v1029 = vunpack.c.l.b16 %v323
    %v1030 = vunpack.c.l.b16 %v324
    %v1031 = vpack.c.b16 %v983, %v982
    %v1032 = vpack.c.b16 %v985, %v984
    %v1033 = vpack.c.b16 %v987, %v986
    %v1034 = vpack.c.b16 %v989, %v988
    %v1035 = vpack.c.b16 %v991, %v990
    %v1036 = vpack.c.b16 %v993, %v992
    %v1037 = vpack.c.b16 %v995, %v994
    %v1038 = vpack.c.b16 %v997, %v996
    %v1039 = vpack.c.b16 %v999, %v998
    %v1040 = vpack.c.b16 %v1001, %v1000
    %v1041 = vpack.c.b16 %v1003, %v1002
    %v1042 = vpack.c.b16 %v1005, %v1004
    %v1043 = vpack.c.b16 %v1007, %v1006
    %v1044 = vpack.c.b16 %v1009, %v1008
    %v1045 = vpack.c.b16 %v1011, %v1010
    %v1046 = vpack.c.b16 %v1013, %v1012
    %v1047 = vpack.c.b16 %v1015, %v1014
    %v1048 = vpack.c.b16 %v1017, %v1016
    %v1049 = vpack.c.b16 %v1019, %v1018
    %v1050 = vpack.c.b16 %v1021, %v1020
    %v1051 = vpack.c.b16 %v1023, %v1022
    %v1052 = vpack.c.b16 %v1025, %v1024
    %v1053 = vpack.c.b16 %v1027, %v1026
    %v1054 = vpack.c.b16 %v1029, %v1028
    %v1055 = vpack.c.b16 %v1030, %v1030
    %vm1080 = vcmask 64512
    %v1082 = vsel %vm1080, %v712, 0
    %v1085 = vsel %vm1080, %v716, 0
    %v1088 = vsel %vm1080, %v720, 0
    %v1091 = vsel %vm1080, %v724, 0
    %v1094 = vsel %vm1080, %v728, 0
    %v1097 = vsel %vm1080, %v732, 0
    %v1100 = vsel %vm1080, %v736, 0
    %v1103 = vsel %vm1080, %v740, 0
    %v1106 = vsel %vm1080, %v744, 0
    %v1109 = vsel %vm1080, %v748, 0
    %v1112 = vsel %vm1080, %v752, 0
    %v1115 = vsel %vm1080, %v756, 0
    %v1118 = vsel %vm1080, %v760, 0
    %v1121 = vsel %vm1080, %v764, 0
    %v1124 = vsel %vm1080, %v768, 0
    %v1127 = vsel %vm1080, %v772, 0
    %v1130 = vsel %vm1080, %v776, 0
    %v1133 = vsel %vm1080, %v780, 0
    %v1136 = vsel %vm1080, %v784, 0
    %v1139 = vsel %vm1080, %v788, 0
    %v1142 = vsel %vm1080, %v792, 0
    %v1145 = vsel %vm1080, %v796, 0
    %v1148 = vsel %vm1080, %v800, 0
    %v1151 = vsel %vm1080, %v804, 0
    %v1154 = vsel %vm1080, %v808, 0
    %v1157 = vsel %vm1080, %v812, 0
    %v1160 = vsel %vm1080, %v816, 0
    %v1163 = vsel %vm1080, %v820, 0
    %v1166 = vsel %vm1080, %v824, 0
    %v1169 = vsel %vm1080, %v828, 0
    %v1172 = vsel %vm1080, %v832, 0
    %v1175 = vsel %vm1080, %v836, 0
    %vm1177 = vcmask 1043456
    %v1179 = vsel %vm1177, %v1055, 0
    %1181 = vmatprep.subr.bf16.mxu0 0
    %1182 = vmatpush1.bf16.msra.mxu0 %v1038
    %1183 = vmatprep.subr.bf16.mxu0 0
    %1184 = vmatpush1.bf16.msra.mxu0 %v1037
    %1185 = vmatprep.subr.bf16.mxu0 0
    %1186 = vmatpush1.bf16.msra.mxu0 %v1036
    %1187 = vmatprep.subr.bf16.mxu0 0
    %1188 = vmatpush1.bf16.msra.mxu0 %v1035
    %1189 = vmatprep.subr.bf16.mxu0 0
    %1190 = vmatpush1.bf16.msra.mxu0 %v1034
    %1191 = vmatprep.subr.bf16.mxu0 0
    %1192 = vmatpush1.bf16.msra.mxu0 %v1033
    %1193 = vmatprep.subr.bf16.mxu0 0
    %1194 = vmatpush1.bf16.msra.mxu0 %v1032
    %1195 = vmatprep.subr.bf16.mxu0 0
    %1196 = vmatpush1.bf16.msra.mxu0 %v1031
    %1197 = vmatprep.subr.bf16.mxu0 0
    %1198 = vmatpush2.bf16.msra.mxu0 %v1046
    %1199 = vmatprep.subr.bf16.mxu0 0
    %1200 = vmatpush2.bf16.msra.mxu0 %v1045
    %1201 = vmatprep.subr.bf16.mxu0 0
    %1202 = vmatpush2.bf16.msra.mxu0 %v1044
    %1203 = vmatprep.subr.bf16.mxu0 0
    %1204 = vmatpush2.bf16.msra.mxu0 %v1043
    %1205 = vmatprep.subr.bf16.mxu0 0
    %1206 = vmatpush2.bf16.msra.mxu0 %v1042
    %1207 = vmatprep.subr.bf16.mxu0 0
    %1208 = vmatpush2.bf16.msra.mxu0 %v1041
    %1209 = vmatprep.subr.bf16.mxu0 0
    %1210 = vmatpush2.bf16.msra.mxu0 %v1040
    %1211 = vmatprep.subr.bf16.mxu0 0
    %1212 = vmatpush2.bf16.msra.mxu0 %v1039
    %1213 = vmatprep.mubr.bf16.mxu0 %v710
    %1214 = vmatmul.mubr.bf16.gmra.mxu0 %v709
    %v1215 = vpop.f32.mrf.mxu0
    %v1216 = vadd.f32 0.0, %v1215
    %v1217 = vpop.f32.mrf.mxu0
    %v1218 = vpop.f32.mrf.mxu0
    %v1219 = vadd.f32 0.0, %v1218
    %v1220 = vpop.f32.mrf.mxu0
    %1221 = vmatprep.mubr.bf16.mxu0 %v714
    %1222 = vmatmul.mubr.bf16.gmra.mxu0 %v713
    %v1223 = vpop.f32.mrf.mxu0
    %v1224 = vadd.f32 0.0, %v1223
    %v1225 = vpop.f32.mrf.mxu0
    %v1226 = vpop.f32.mrf.mxu0
    %v1227 = vadd.f32 0.0, %v1226
    %v1228 = vpop.f32.mrf.mxu0
    %1229 = vmatprep.mubr.bf16.mxu0 %v718
    %1230 = vmatmul.mubr.bf16.gmra.mxu0 %v717
    %v1231 = vpop.f32.mrf.mxu0
    %v1232 = vadd.f32 0.0, %v1231
    %v1233 = vpop.f32.mrf.mxu0
    %v1234 = vpop.f32.mrf.mxu0
    %v1235 = vadd.f32 0.0, %v1234
    %v1236 = vpop.f32.mrf.mxu0
    %1237 = vmatprep.mubr.bf16.mxu0 %v722
    %1238 = vmatmul.mubr.bf16.gmra.mxu0 %v721
    %v1239 = vpop.f32.mrf.mxu0
    %v1240 = vadd.f32 0.0, %v1239
    %v1241 = vpop.f32.mrf.mxu0
    %v1242 = vpop.f32.mrf.mxu0
    %v1243 = vadd.f32 0.0, %v1242
    %v1244 = vpop.f32.mrf.mxu0
    %1245 = vmatprep.mubr.bf16.mxu0 %v726
    %1246 = vmatmul.mubr.bf16.gmra.mxu0 %v725
    %v1247 = vpop.f32.mrf.mxu0
    %v1248 = vadd.f32 0.0, %v1247
    %v1249 = vpop.f32.mrf.mxu0
    %v1250 = vpop.f32.mrf.mxu0
    %v1251 = vadd.f32 0.0, %v1250
    %v1252 = vpop.f32.mrf.mxu0
    %1253 = vmatprep.mubr.bf16.mxu0 %v730
    %1254 = vmatmul.mubr.bf16.gmra.mxu0 %v729
    %v1255 = vpop.f32.mrf.mxu0
    %v1256 = vadd.f32 0.0, %v1255
    %v1257 = vpop.f32.mrf.mxu0
    %v1258 = vpop.f32.mrf.mxu0
    %v1259 = vadd.f32 0.0, %v1258
    %v1260 = vpop.f32.mrf.mxu0
    %1261 = vmatprep.mubr.bf16.mxu0 %v734
    %1262 = vmatmul.mubr.bf16.gmra.mxu0 %v733
    %v1263 = vpop.f32.mrf.mxu0
    %v1264 = vadd.f32 0.0, %v1263
    %v1265 = vpop.f32.mrf.mxu0
    %v1266 = vpop.f32.mrf.mxu0
    %v1267 = vadd.f32 0.0, %v1266
    %v1268 = vpop.f32.mrf.mxu0
    %1269 = vmatprep.mubr.bf16.mxu0 %v738
    %1270 = vmatmul.mubr.bf16.gmra.mxu0 %v737
    %v1271 = vpop.f32.mrf.mxu0
    %v1272 = vadd.f32 0.0, %v1271
    %v1273 = vpop.f32.mrf.mxu0
    %v1274 = vpop.f32.mrf.mxu0
    %v1275 = vadd.f32 0.0, %v1274
    %v1276 = vpop.f32.mrf.mxu0
    %1277 = vmatprep.mubr.bf16.mxu0 %v742
    %1278 = vmatmul.mubr.bf16.gmra.mxu0 %v741
    %v1279 = vpop.f32.mrf.mxu0
    %v1280 = vadd.f32 0.0, %v1279
    %v1281 = vpop.f32.mrf.mxu0
    %v1282 = vpop.f32.mrf.mxu0
    %v1283 = vadd.f32 0.0, %v1282
    %v1284 = vpop.f32.mrf.mxu0
    %1285 = vmatprep.mubr.bf16.mxu0 %v746
    %1286 = vmatmul.mubr.bf16.gmra.mxu0 %v745
    %v1287 = vpop.f32.mrf.mxu0
    %v1288 = vadd.f32 0.0, %v1287
    %v1289 = vpop.f32.mrf.mxu0
    %v1290 = vpop.f32.mrf.mxu0
    %v1291 = vadd.f32 0.0, %v1290
    %v1292 = vpop.f32.mrf.mxu0
    %1293 = vmatprep.mubr.bf16.mxu0 %v750
    %1294 = vmatmul.mubr.bf16.gmra.mxu0 %v749
    %v1295 = vpop.f32.mrf.mxu0
    %v1296 = vadd.f32 0.0, %v1295
    %v1297 = vpop.f32.mrf.mxu0
    %v1298 = vpop.f32.mrf.mxu0
    %v1299 = vadd.f32 0.0, %v1298
    %v1300 = vpop.f32.mrf.mxu0
    %1301 = vmatprep.mubr.bf16.mxu0 %v754
    %1302 = vmatmul.mubr.bf16.gmra.mxu0 %v753
    %v1303 = vpop.f32.mrf.mxu0
    %v1304 = vadd.f32 0.0, %v1303
    %v1305 = vpop.f32.mrf.mxu0
    %v1306 = vpop.f32.mrf.mxu0
    %v1307 = vadd.f32 0.0, %v1306
    %v1308 = vpop.f32.mrf.mxu0
    %1309 = vmatprep.mubr.bf16.mxu0 %v758
    %1310 = vmatmul.mubr.bf16.gmra.mxu0 %v757
    %v1311 = vpop.f32.mrf.mxu0
    %v1312 = vadd.f32 0.0, %v1311
    %v1313 = vpop.f32.mrf.mxu0
    %v1314 = vpop.f32.mrf.mxu0
    %v1315 = vadd.f32 0.0, %v1314
    %v1316 = vpop.f32.mrf.mxu0
    %1317 = vmatprep.mubr.bf16.mxu0 %v762
    %1318 = vmatmul.mubr.bf16.gmra.mxu0 %v761
    %v1319 = vpop.f32.mrf.mxu0
    %v1320 = vadd.f32 0.0, %v1319
    %v1321 = vpop.f32.mrf.mxu0
    %v1322 = vpop.f32.mrf.mxu0
    %v1323 = vadd.f32 0.0, %v1322
    %v1324 = vpop.f32.mrf.mxu0
    %1325 = vmatprep.mubr.bf16.mxu0 %v766
    %1326 = vmatmul.mubr.bf16.gmra.mxu0 %v765
    %v1327 = vpop.f32.mrf.mxu0
    %v1328 = vadd.f32 0.0, %v1327
    %v1329 = vpop.f32.mrf.mxu0
    %v1330 = vpop.f32.mrf.mxu0
    %v1331 = vadd.f32 0.0, %v1330
    %v1332 = vpop.f32.mrf.mxu0
    %1333 = vmatprep.mubr.bf16.mxu0 %v770
    %1334 = vmatmul.mubr.bf16.gmra.mxu0 %v769
    %v1335 = vpop.f32.mrf.mxu0
    %v1336 = vadd.f32 0.0, %v1335
    %v1337 = vpop.f32.mrf.mxu0
    %v1338 = vpop.f32.mrf.mxu0
    %v1339 = vadd.f32 0.0, %v1338
    %v1340 = vpop.f32.mrf.mxu0
    %1341 = vmatprep.mubr.bf16.mxu0 %v774
    %1342 = vmatmul.mubr.bf16.gmra.mxu0 %v773
    %v1343 = vpop.f32.mrf.mxu0
    %v1344 = vadd.f32 0.0, %v1343
    %v1345 = vpop.f32.mrf.mxu0
    %v1346 = vpop.f32.mrf.mxu0
    %v1347 = vadd.f32 0.0, %v1346
    %v1348 = vpop.f32.mrf.mxu0
    %1349 = vmatprep.mubr.bf16.mxu0 %v778
    %1350 = vmatmul.mubr.bf16.gmra.mxu0 %v777
    %v1351 = vpop.f32.mrf.mxu0
    %v1352 = vadd.f32 0.0, %v1351
    %v1353 = vpop.f32.mrf.mxu0
    %v1354 = vpop.f32.mrf.mxu0
    %v1355 = vadd.f32 0.0, %v1354
    %v1356 = vpop.f32.mrf.mxu0
    %1357 = vmatprep.mubr.bf16.mxu0 %v782
    %1358 = vmatmul.mubr.bf16.gmra.mxu0 %v781
    %v1359 = vpop.f32.mrf.mxu0
    %v1360 = vadd.f32 0.0, %v1359
    %v1361 = vpop.f32.mrf.mxu0
    %v1362 = vpop.f32.mrf.mxu0
    %v1363 = vadd.f32 0.0, %v1362
    %v1364 = vpop.f32.mrf.mxu0
    %1365 = vmatprep.mubr.bf16.mxu0 %v786
    %1366 = vmatmul.mubr.bf16.gmra.mxu0 %v785
    %v1367 = vpop.f32.mrf.mxu0
    %v1368 = vadd.f32 0.0, %v1367
    %v1369 = vpop.f32.mrf.mxu0
    %v1370 = vpop.f32.mrf.mxu0
    %v1371 = vadd.f32 0.0, %v1370
    %v1372 = vpop.f32.mrf.mxu0
    %1373 = vmatprep.mubr.bf16.mxu0 %v790
    %1374 = vmatmul.mubr.bf16.gmra.mxu0 %v789
    %v1375 = vpop.f32.mrf.mxu0
    %v1376 = vadd.f32 0.0, %v1375
    %v1377 = vpop.f32.mrf.mxu0
    %v1378 = vpop.f32.mrf.mxu0
    %v1379 = vadd.f32 0.0, %v1378
    %v1380 = vpop.f32.mrf.mxu0
    %1381 = vmatprep.mubr.bf16.mxu0 %v794
    %1382 = vmatmul.mubr.bf16.gmra.mxu0 %v793
    %v1383 = vpop.f32.mrf.mxu0
    %v1384 = vadd.f32 0.0, %v1383
    %v1385 = vpop.f32.mrf.mxu0
    %v1386 = vpop.f32.mrf.mxu0
    %v1387 = vadd.f32 0.0, %v1386
    %v1388 = vpop.f32.mrf.mxu0
    %1389 = vmatprep.mubr.bf16.mxu0 %v798
    %1390 = vmatmul.mubr.bf16.gmra.mxu0 %v797
    %v1391 = vpop.f32.mrf.mxu0
    %v1392 = vadd.f32 0.0, %v1391
    %v1393 = vpop.f32.mrf.mxu0
    %v1394 = vpop.f32.mrf.mxu0
    %v1395 = vadd.f32 0.0, %v1394
    %v1396 = vpop.f32.mrf.mxu0
    %1397 = vmatprep.mubr.bf16.mxu0 %v802
    %1398 = vmatmul.mubr.bf16.gmra.mxu0 %v801
    %v1399 = vpop.f32.mrf.mxu0
    %v1400 = vadd.f32 0.0, %v1399
    %v1401 = vpop.f32.mrf.mxu0
    %v1402 = vpop.f32.mrf.mxu0
    %v1403 = vadd.f32 0.0, %v1402
    %v1404 = vpop.f32.mrf.mxu0
    %1405 = vmatprep.mubr.bf16.mxu0 %v806
    %1406 = vmatmul.mubr.bf16.gmra.mxu0 %v805
    %v1407 = vpop.f32.mrf.mxu0
    %v1408 = vadd.f32 0.0, %v1407
    %v1409 = vpop.f32.mrf.mxu0
    %v1410 = vpop.f32.mrf.mxu0
    %v1411 = vadd.f32 0.0, %v1410
    %v1412 = vpop.f32.mrf.mxu0
    %1413 = vmatprep.mubr.bf16.mxu0 %v810
    %1414 = vmatmul.mubr.bf16.gmra.mxu0 %v809
    %v1415 = vpop.f32.mrf.mxu0
    %v1416 = vadd.f32 0.0, %v1415
    %v1417 = vpop.f32.mrf.mxu0
    %v1418 = vpop.f32.mrf.mxu0
    %v1419 = vadd.f32 0.0, %v1418
    %v1420 = vpop.f32.mrf.mxu0
    %1421 = vmatprep.mubr.bf16.mxu0 %v814
    %1422 = vmatmul.mubr.bf16.gmra.mxu0 %v813
    %v1423 = vpop.f32.mrf.mxu0
    %v1424 = vadd.f32 0.0, %v1423
    %v1425 = vpop.f32.mrf.mxu0
    %v1426 = vpop.f32.mrf.mxu0
    %v1427 = vadd.f32 0.0, %v1426
    %v1428 = vpop.f32.mrf.mxu0
    %1429 = vmatprep.mubr.bf16.mxu0 %v818
    %1430 = vmatmul.mubr.bf16.gmra.mxu0 %v817
    %v1431 = vpop.f32.mrf.mxu0
    %v1432 = vadd.f32 0.0, %v1431
    %v1433 = vpop.f32.mrf.mxu0
    %v1434 = vpop.f32.mrf.mxu0
    %v1435 = vadd.f32 0.0, %v1434
    %v1436 = vpop.f32.mrf.mxu0
    %1437 = vmatprep.mubr.bf16.mxu0 %v822
    %1438 = vmatmul.mubr.bf16.gmra.mxu0 %v821
    %v1439 = vpop.f32.mrf.mxu0
    %v1440 = vadd.f32 0.0, %v1439
    %v1441 = vpop.f32.mrf.mxu0
    %v1442 = vpop.f32.mrf.mxu0
    %v1443 = vadd.f32 0.0, %v1442
    %v1444 = vpop.f32.mrf.mxu0
    %1445 = vmatprep.mubr.bf16.mxu0 %v826
    %1446 = vmatmul.mubr.bf16.gmra.mxu0 %v825
    %v1447 = vpop.f32.mrf.mxu0
    %v1448 = vadd.f32 0.0, %v1447
    %v1449 = vpop.f32.mrf.mxu0
    %v1450 = vpop.f32.mrf.mxu0
    %v1451 = vadd.f32 0.0, %v1450
    %v1452 = vpop.f32.mrf.mxu0
    %1453 = vmatprep.mubr.bf16.mxu0 %v830
    %1454 = vmatmul.mubr.bf16.gmra.mxu0 %v829
    %v1455 = vpop.f32.mrf.mxu0
    %v1456 = vadd.f32 0.0, %v1455
    %v1457 = vpop.f32.mrf.mxu0
    %v1458 = vpop.f32.mrf.mxu0
    %v1459 = vadd.f32 0.0, %v1458
    %v1460 = vpop.f32.mrf.mxu0
    %1461 = vmatprep.mubr.bf16.mxu0 %v834
    %1462 = vmatmul.mubr.bf16.gmra.mxu0 %v833
    %v1463 = vpop.f32.mrf.mxu0
    %v1464 = vadd.f32 0.0, %v1463
    %v1465 = vpop.f32.mrf.mxu0
    %v1466 = vpop.f32.mrf.mxu0
    %v1467 = vadd.f32 0.0, %v1466
    %v1468 = vpop.f32.mrf.mxu0
    %1469 = vdwg.mxu0
    %1470 = vmatprep.subr.bf16.mxu0 0
    %1471 = vmatpush1.bf16.msra.mxu0 %v1054
    %1472 = vmatprep.subr.bf16.mxu0 0
    %1473 = vmatpush1.bf16.msra.mxu0 %v1053
    %1474 = vmatprep.subr.bf16.mxu0 0
    %1475 = vmatpush1.bf16.msra.mxu0 %v1052
    %1476 = vmatprep.subr.bf16.mxu0 0
    %1477 = vmatpush1.bf16.msra.mxu0 %v1051
    %1478 = vmatprep.subr.bf16.mxu0 0
    %1479 = vmatpush1.bf16.msra.mxu0 %v1050
    %1480 = vmatprep.subr.bf16.mxu0 0
    %1481 = vmatpush1.bf16.msra.mxu0 %v1049
    %1482 = vmatprep.subr.bf16.mxu0 0
    %1483 = vmatpush1.bf16.msra.mxu0 %v1048
    %1484 = vmatprep.subr.bf16.mxu0 0
    %1485 = vmatpush1.bf16.msra.mxu0 %v1047
    %1486 = vmatprep.subr.bf16.mxu0 0
    %1487 = vmatpush2.bf16.msra.mxu0 0
    %1488 = vmatprep.subr.bf16.mxu0 0
    %1489 = vmatpush2.bf16.msra.mxu0 0
    %1490 = vmatprep.subr.bf16.mxu0 0
    %1491 = vmatpush2.bf16.msra.mxu0 0
    %1492 = vmatprep.subr.bf16.mxu0 0
    %1493 = vmatpush2.bf16.msra.mxu0 0
    %1494 = vmatprep.subr.bf16.mxu0 0
    %1495 = vmatpush2.bf16.msra.mxu0 0
    %1496 = vmatprep.subr.bf16.mxu0 0
    %1497 = vmatpush2.bf16.msra.mxu0 0
    %1498 = vmatprep.subr.bf16.mxu0 0
    %1499 = vmatpush2.bf16.msra.mxu0 0
    %1500 = vmatprep.subr.bf16.mxu0 0
    %1501 = vmatpush2.bf16.msra.mxu0 %v1179
    %1502 = vmatprep.mubr.bf16.mxu0 %v1082
    %1503 = vmatmul.mubr.bf16.gmra.mxu0 %v711
    %v1504 = vpop.f32.mrf.mxu0
    %v1505 = vadd.f32 %v1216, %v1504
    %v1506 = vpop.f32.mrf.mxu0
    %v1507 = vpop.f32.mrf.mxu0
    %v1508 = vadd.f32 %v1219, %v1507
    %v1509 = vpop.f32.mrf.mxu0
    %1510 = vmatprep.mubr.bf16.mxu0 %v1085
    %1511 = vmatmul.mubr.bf16.gmra.mxu0 %v715
    %v1512 = vpop.f32.mrf.mxu0
    %v1513 = vadd.f32 %v1224, %v1512
    %v1514 = vpop.f32.mrf.mxu0
    %v1515 = vpop.f32.mrf.mxu0
    %v1516 = vadd.f32 %v1227, %v1515
    %v1517 = vpop.f32.mrf.mxu0
    %1518 = vmatprep.mubr.bf16.mxu0 %v1088
    %1519 = vmatmul.mubr.bf16.gmra.mxu0 %v719
    %v1520 = vpop.f32.mrf.mxu0
    %v1521 = vadd.f32 %v1232, %v1520
    %v1522 = vpop.f32.mrf.mxu0
    %v1523 = vpop.f32.mrf.mxu0
    %v1524 = vadd.f32 %v1235, %v1523
    %v1525 = vpop.f32.mrf.mxu0
    %1526 = vmatprep.mubr.bf16.mxu0 %v1091
    %1527 = vmatmul.mubr.bf16.gmra.mxu0 %v723
    %v1528 = vpop.f32.mrf.mxu0
    %v1529 = vadd.f32 %v1240, %v1528
    %v1530 = vpop.f32.mrf.mxu0
    %v1531 = vpop.f32.mrf.mxu0
    %v1532 = vadd.f32 %v1243, %v1531
    %v1533 = vpop.f32.mrf.mxu0
    %1534 = vmatprep.mubr.bf16.mxu0 %v1094
    %1535 = vmatmul.mubr.bf16.gmra.mxu0 %v727
    %v1536 = vpop.f32.mrf.mxu0
    %v1537 = vadd.f32 %v1248, %v1536
    %v1538 = vpop.f32.mrf.mxu0
    %v1539 = vpop.f32.mrf.mxu0
    %v1540 = vadd.f32 %v1251, %v1539
    %v1541 = vpop.f32.mrf.mxu0
    %1542 = vmatprep.mubr.bf16.mxu0 %v1097
    %1543 = vmatmul.mubr.bf16.gmra.mxu0 %v731
    %v1544 = vpop.f32.mrf.mxu0
    %v1545 = vadd.f32 %v1256, %v1544
    %v1546 = vpop.f32.mrf.mxu0
    %v1547 = vpop.f32.mrf.mxu0
    %v1548 = vadd.f32 %v1259, %v1547
    %v1549 = vpop.f32.mrf.mxu0
    %1550 = vmatprep.mubr.bf16.mxu0 %v1100
    %1551 = vmatmul.mubr.bf16.gmra.mxu0 %v735
    %v1552 = vpop.f32.mrf.mxu0
    %v1553 = vadd.f32 %v1264, %v1552
    %v1554 = vpop.f32.mrf.mxu0
    %v1555 = vpop.f32.mrf.mxu0
    %v1556 = vadd.f32 %v1267, %v1555
    %v1557 = vpop.f32.mrf.mxu0
    %1558 = vmatprep.mubr.bf16.mxu0 %v1103
    %1559 = vmatmul.mubr.bf16.gmra.mxu0 %v739
    %v1560 = vpop.f32.mrf.mxu0
    %v1561 = vadd.f32 %v1272, %v1560
    %v1562 = vpop.f32.mrf.mxu0
    %v1563 = vpop.f32.mrf.mxu0
    %v1564 = vadd.f32 %v1275, %v1563
    %v1565 = vpop.f32.mrf.mxu0
    %1566 = vmatprep.mubr.bf16.mxu0 %v1106
    %1567 = vmatmul.mubr.bf16.gmra.mxu0 %v743
    %v1568 = vpop.f32.mrf.mxu0
    %v1569 = vadd.f32 %v1280, %v1568
    %v1570 = vpop.f32.mrf.mxu0
    %v1571 = vpop.f32.mrf.mxu0
    %v1572 = vadd.f32 %v1283, %v1571
    %v1573 = vpop.f32.mrf.mxu0
    %1574 = vmatprep.mubr.bf16.mxu0 %v1109
    %1575 = vmatmul.mubr.bf16.gmra.mxu0 %v747
    %v1576 = vpop.f32.mrf.mxu0
    %v1577 = vadd.f32 %v1288, %v1576
    %v1578 = vpop.f32.mrf.mxu0
    %v1579 = vpop.f32.mrf.mxu0
    %v1580 = vadd.f32 %v1291, %v1579
    %v1581 = vpop.f32.mrf.mxu0
    %1582 = vmatprep.mubr.bf16.mxu0 %v1112
    %1583 = vmatmul.mubr.bf16.gmra.mxu0 %v751
    %v1584 = vpop.f32.mrf.mxu0
    %v1585 = vadd.f32 %v1296, %v1584
    %v1586 = vpop.f32.mrf.mxu0
    %v1587 = vpop.f32.mrf.mxu0
    %v1588 = vadd.f32 %v1299, %v1587
    %v1589 = vpop.f32.mrf.mxu0
    %1590 = vmatprep.mubr.bf16.mxu0 %v1115
    %1591 = vmatmul.mubr.bf16.gmra.mxu0 %v755
    %v1592 = vpop.f32.mrf.mxu0
    %v1593 = vadd.f32 %v1304, %v1592
    %v1594 = vpop.f32.mrf.mxu0
    %v1595 = vpop.f32.mrf.mxu0
    %v1596 = vadd.f32 %v1307, %v1595
    %v1597 = vpop.f32.mrf.mxu0
    %1598 = vmatprep.mubr.bf16.mxu0 %v1118
    %1599 = vmatmul.mubr.bf16.gmra.mxu0 %v759
    %v1600 = vpop.f32.mrf.mxu0
    %v1601 = vadd.f32 %v1312, %v1600
    %v1602 = vpop.f32.mrf.mxu0
    %v1603 = vpop.f32.mrf.mxu0
    %v1604 = vadd.f32 %v1315, %v1603
    %v1605 = vpop.f32.mrf.mxu0
    %1606 = vmatprep.mubr.bf16.mxu0 %v1121
    %1607 = vmatmul.mubr.bf16.gmra.mxu0 %v763
    %v1608 = vpop.f32.mrf.mxu0
    %v1609 = vadd.f32 %v1320, %v1608
    %v1610 = vpop.f32.mrf.mxu0
    %v1611 = vpop.f32.mrf.mxu0
    %v1612 = vadd.f32 %v1323, %v1611
    %v1613 = vpop.f32.mrf.mxu0
    %1614 = vmatprep.mubr.bf16.mxu0 %v1124
    %1615 = vmatmul.mubr.bf16.gmra.mxu0 %v767
    %v1616 = vpop.f32.mrf.mxu0
    %v1617 = vadd.f32 %v1328, %v1616
    %v1618 = vpop.f32.mrf.mxu0
    %v1619 = vpop.f32.mrf.mxu0
    %v1620 = vadd.f32 %v1331, %v1619
    %v1621 = vpop.f32.mrf.mxu0
    %1622 = vmatprep.mubr.bf16.mxu0 %v1127
    %1623 = vmatmul.mubr.bf16.gmra.mxu0 %v771
    %v1624 = vpop.f32.mrf.mxu0
    %v1625 = vadd.f32 %v1336, %v1624
    %v1626 = vpop.f32.mrf.mxu0
    %v1627 = vpop.f32.mrf.mxu0
    %v1628 = vadd.f32 %v1339, %v1627
    %v1629 = vpop.f32.mrf.mxu0
    %1630 = vmatprep.mubr.bf16.mxu0 %v1130
    %1631 = vmatmul.mubr.bf16.gmra.mxu0 %v775
    %v1632 = vpop.f32.mrf.mxu0
    %v1633 = vadd.f32 %v1344, %v1632
    %v1634 = vpop.f32.mrf.mxu0
    %v1635 = vpop.f32.mrf.mxu0
    %v1636 = vadd.f32 %v1347, %v1635
    %v1637 = vpop.f32.mrf.mxu0
    %1638 = vmatprep.mubr.bf16.mxu0 %v1133
    %1639 = vmatmul.mubr.bf16.gmra.mxu0 %v779
    %v1640 = vpop.f32.mrf.mxu0
    %v1641 = vadd.f32 %v1352, %v1640
    %v1642 = vpop.f32.mrf.mxu0
    %v1643 = vpop.f32.mrf.mxu0
    %v1644 = vadd.f32 %v1355, %v1643
    %v1645 = vpop.f32.mrf.mxu0
    %1646 = vmatprep.mubr.bf16.mxu0 %v1136
    %1647 = vmatmul.mubr.bf16.gmra.mxu0 %v783
    %v1648 = vpop.f32.mrf.mxu0
    %v1649 = vadd.f32 %v1360, %v1648
    %v1650 = vpop.f32.mrf.mxu0
    %v1651 = vpop.f32.mrf.mxu0
    %v1652 = vadd.f32 %v1363, %v1651
    %v1653 = vpop.f32.mrf.mxu0
    %1654 = vmatprep.mubr.bf16.mxu0 %v1139
    %1655 = vmatmul.mubr.bf16.gmra.mxu0 %v787
    %v1656 = vpop.f32.mrf.mxu0
    %v1657 = vadd.f32 %v1368, %v1656
    %v1658 = vpop.f32.mrf.mxu0
    %v1659 = vpop.f32.mrf.mxu0
    %v1660 = vadd.f32 %v1371, %v1659
    %v1661 = vpop.f32.mrf.mxu0
    %1662 = vmatprep.mubr.bf16.mxu0 %v1142
    %1663 = vmatmul.mubr.bf16.gmra.mxu0 %v791
    %v1664 = vpop.f32.mrf.mxu0
    %v1665 = vadd.f32 %v1376, %v1664
    %v1666 = vpop.f32.mrf.mxu0
    %v1667 = vpop.f32.mrf.mxu0
    %v1668 = vadd.f32 %v1379, %v1667
    %v1669 = vpop.f32.mrf.mxu0
    %1670 = vmatprep.mubr.bf16.mxu0 %v1145
    %1671 = vmatmul.mubr.bf16.gmra.mxu0 %v795
    %v1672 = vpop.f32.mrf.mxu0
    %v1673 = vadd.f32 %v1384, %v1672
    %v1674 = vpop.f32.mrf.mxu0
    %v1675 = vpop.f32.mrf.mxu0
    %v1676 = vadd.f32 %v1387, %v1675
    %v1677 = vpop.f32.mrf.mxu0
    %1678 = vmatprep.mubr.bf16.mxu0 %v1148
    %1679 = vmatmul.mubr.bf16.gmra.mxu0 %v799
    %v1680 = vpop.f32.mrf.mxu0
    %v1681 = vadd.f32 %v1392, %v1680
    %v1682 = vpop.f32.mrf.mxu0
    %v1683 = vpop.f32.mrf.mxu0
    %v1684 = vadd.f32 %v1395, %v1683
    %v1685 = vpop.f32.mrf.mxu0
    %1686 = vmatprep.mubr.bf16.mxu0 %v1151
    %1687 = vmatmul.mubr.bf16.gmra.mxu0 %v803
    %v1688 = vpop.f32.mrf.mxu0
    %v1689 = vadd.f32 %v1400, %v1688
    %v1690 = vpop.f32.mrf.mxu0
    %v1691 = vpop.f32.mrf.mxu0
    %v1692 = vadd.f32 %v1403, %v1691
    %v1693 = vpop.f32.mrf.mxu0
    %1694 = vmatprep.mubr.bf16.mxu0 %v1154
    %1695 = vmatmul.mubr.bf16.gmra.mxu0 %v807
    %v1696 = vpop.f32.mrf.mxu0
    %v1697 = vadd.f32 %v1408, %v1696
    %v1698 = vpop.f32.mrf.mxu0
    %v1699 = vpop.f32.mrf.mxu0
    %v1700 = vadd.f32 %v1411, %v1699
    %v1701 = vpop.f32.mrf.mxu0
    %1702 = vmatprep.mubr.bf16.mxu0 %v1157
    %1703 = vmatmul.mubr.bf16.gmra.mxu0 %v811
    %v1704 = vpop.f32.mrf.mxu0
    %v1705 = vadd.f32 %v1416, %v1704
    %v1706 = vpop.f32.mrf.mxu0
    %v1707 = vpop.f32.mrf.mxu0
    %v1708 = vadd.f32 %v1419, %v1707
    %v1709 = vpop.f32.mrf.mxu0
    %1710 = vmatprep.mubr.bf16.mxu0 %v1160
    %1711 = vmatmul.mubr.bf16.gmra.mxu0 %v815
    %v1712 = vpop.f32.mrf.mxu0
    %v1713 = vadd.f32 %v1424, %v1712
    %v1714 = vpop.f32.mrf.mxu0
    %v1715 = vpop.f32.mrf.mxu0
    %v1716 = vadd.f32 %v1427, %v1715
    %v1717 = vpop.f32.mrf.mxu0
    %1718 = vmatprep.mubr.bf16.mxu0 %v1163
    %1719 = vmatmul.mubr.bf16.gmra.mxu0 %v819
    %v1720 = vpop.f32.mrf.mxu0
    %v1721 = vadd.f32 %v1432, %v1720
    %v1722 = vpop.f32.mrf.mxu0
    %v1723 = vpop.f32.mrf.mxu0
    %v1724 = vadd.f32 %v1435, %v1723
    %v1725 = vpop.f32.mrf.mxu0
    %1726 = vmatprep.mubr.bf16.mxu0 %v1166
    %1727 = vmatmul.mubr.bf16.gmra.mxu0 %v823
    %v1728 = vpop.f32.mrf.mxu0
    %v1729 = vadd.f32 %v1440, %v1728
    %v1730 = vpop.f32.mrf.mxu0
    %v1731 = vpop.f32.mrf.mxu0
    %v1732 = vadd.f32 %v1443, %v1731
    %v1733 = vpop.f32.mrf.mxu0
    %1734 = vmatprep.mubr.bf16.mxu0 %v1169
    %1735 = vmatmul.mubr.bf16.gmra.mxu0 %v827
    %v1736 = vpop.f32.mrf.mxu0
    %v1737 = vadd.f32 %v1448, %v1736
    %v1738 = vpop.f32.mrf.mxu0
    %v1739 = vpop.f32.mrf.mxu0
    %v1740 = vadd.f32 %v1451, %v1739
    %v1741 = vpop.f32.mrf.mxu0
    %1742 = vmatprep.mubr.bf16.mxu0 %v1172
    %1743 = vmatmul.mubr.bf16.gmra.mxu0 %v831
    %v1744 = vpop.f32.mrf.mxu0
    %v1745 = vadd.f32 %v1456, %v1744
    %v1746 = vpop.f32.mrf.mxu0
    %v1747 = vpop.f32.mrf.mxu0
    %v1748 = vadd.f32 %v1459, %v1747
    %v1749 = vpop.f32.mrf.mxu0
    %1750 = vmatprep.mubr.bf16.mxu0 %v1175
    %1751 = vmatmul.mubr.bf16.gmra.mxu0 %v835
    %v1752 = vpop.f32.mrf.mxu0
    %v1753 = vadd.f32 %v1464, %v1752
    %v1754 = vpop.f32.mrf.mxu0
    %v1755 = vpop.f32.mrf.mxu0
    %v1756 = vadd.f32 %v1467, %v1755
    %v1757 = vpop.f32.mrf.mxu0
    %1758 = vdwg.mxu0
    %v1759 = vadd.f32 %v84, %v1505
    %v1760 = vadd.f32 %v85, %v1508
    %v1761 = vadd.f32 %v86, %v1513
    %v1762 = vadd.f32 %v87, %v1516
    %v1763 = vadd.f32 %v88, %v1521
    %v1764 = vadd.f32 %v89, %v1524
    %v1765 = vadd.f32 %v90, %v1529
    %v1766 = vadd.f32 %v91, %v1532
    %v1767 = vadd.f32 %v92, %v1537
    %v1768 = vadd.f32 %v93, %v1540
    %v1769 = vadd.f32 %v94, %v1545
    %v1770 = vadd.f32 %v95, %v1548
    %v1771 = vadd.f32 %v96, %v1553
    %v1772 = vadd.f32 %v97, %v1556
    %v1773 = vadd.f32 %v98, %v1561
    %v1774 = vadd.f32 %v99, %v1564
    %v1775 = vadd.f32 %v100, %v1569
    %v1776 = vadd.f32 %v101, %v1572
    %v1777 = vadd.f32 %v102, %v1577
    %v1778 = vadd.f32 %v103, %v1580
    %v1779 = vadd.f32 %v104, %v1585
    %v1780 = vadd.f32 %v105, %v1588
    %v1781 = vadd.f32 %v106, %v1593
    %v1782 = vadd.f32 %v107, %v1596
    %v1783 = vadd.f32 %v108, %v1601
    %v1784 = vadd.f32 %v109, %v1604
    %v1785 = vadd.f32 %v110, %v1609
    %v1786 = vadd.f32 %v111, %v1612
    %v1787 = vadd.f32 %v112, %v1617
    %v1788 = vadd.f32 %v113, %v1620
    %v1789 = vadd.f32 %v114, %v1625
    %v1790 = vadd.f32 %v115, %v1628
    %v1791 = vadd.f32 %v116, %v1633
    %v1792 = vadd.f32 %v117, %v1636
    %v1793 = vadd.f32 %v118, %v1641
    %v1794 = vadd.f32 %v119, %v1644
    %v1795 = vadd.f32 %v120, %v1649
    %v1796 = vadd.f32 %v121, %v1652
    %v1797 = vadd.f32 %v122, %v1657
    %v1798 = vadd.f32 %v123, %v1660
    %v1799 = vadd.f32 %v124, %v1665
    %v1800 = vadd.f32 %v125, %v1668
    %v1801 = vadd.f32 %v126, %v1673
    %v1802 = vadd.f32 %v127, %v1676
    %v1803 = vadd.f32 %v128, %v1681
    %v1804 = vadd.f32 %v129, %v1684
    %v1805 = vadd.f32 %v130, %v1689
    %v1806 = vadd.f32 %v131, %v1692
    %v1807 = vadd.f32 %v132, %v1697
    %v1808 = vadd.f32 %v133, %v1700
    %v1809 = vadd.f32 %v134, %v1705
    %v1810 = vadd.f32 %v135, %v1708
    %v1811 = vadd.f32 %v136, %v1713
    %v1812 = vadd.f32 %v137, %v1716
    %v1813 = vadd.f32 %v138, %v1721
    %v1814 = vadd.f32 %v139, %v1724
    %v1815 = vadd.f32 %v140, %v1729
    %v1816 = vadd.f32 %v141, %v1732
    %v1817 = vadd.f32 %v142, %v1737
    %v1818 = vadd.f32 %v143, %v1740
    %v1819 = vadd.f32 %v144, %v1745
    %v1820 = vadd.f32 %v145, %v1748
    %v1821 = vadd.f32 %v146, %v1753
    %v1822 = vadd.f32 %v147, %v1756
    %1823 = vst [vmem:[#allocation2] sm:$0xff] %v1759
    %1824 = vst [vmem:[#allocation2 + $0x8] sm:$0xff] %v1760
    %1825 = vst [vmem:[#allocation2 + $0x10] sm:$0xff] %v1761
    %1826 = vst [vmem:[#allocation2 + $0x18] sm:$0xff] %v1762
    %1827 = vst [vmem:[#allocation2 + $0x20] sm:$0xff] %v1763
    %1828 = vst [vmem:[#allocation2 + $0x28] sm:$0xff] %v1764
    %1829 = vst [vmem:[#allocation2 + $0x30] sm:$0xff] %v1765
    %1830 = vst [vmem:[#allocation2 + $0x38] sm:$0xff] %v1766
    %1831 = vst [vmem:[#allocation2 + $0x40] sm:$0xff] %v1767
    %1832 = vst [vmem:[#allocation2 + $0x48] sm:$0xff] %v1768
    %1833 = vst [vmem:[#allocation2 + $0x50] sm:$0xff] %v1769
    %1834 = vst [vmem:[#allocation2 + $0x58] sm:$0xff] %v1770
    %1835 = vst [vmem:[#allocation2 + $0x60] sm:$0xff] %v1771
    %1836 = vst [vmem:[#allocation2 + $0x68] sm:$0xff] %v1772
    %1837 = vst [vmem:[#allocation2 + $0x70] sm:$0xff] %v1773
    %1838 = vst [vmem:[#allocation2 + $0x78] sm:$0xff] %v1774
    %1839 = vst [vmem:[#allocation2 + $0x80] sm:$0xff] %v1775
    %1840 = vst [vmem:[#allocation2 + $0x88] sm:$0xff] %v1776
    %1841 = vst [vmem:[#allocation2 + $0x90] sm:$0xff] %v1777
    %1842 = vst [vmem:[#allocation2 + $0x98] sm:$0xff] %v1778
    %1843 = vst [vmem:[#allocation2 + $0xa0] sm:$0xff] %v1779
    %1844 = vst [vmem:[#allocation2 + $0xa8] sm:$0xff] %v1780
    %1845 = vst [vmem:[#allocation2 + $0xb0] sm:$0xff] %v1781
    %1846 = vst [vmem:[#allocation2 + $0xb8] sm:$0xff] %v1782
    %1847 = vst [vmem:[#allocation2 + $0xc0] sm:$0xff] %v1783
    %1848 = vst [vmem:[#allocation2 + $0xc8] sm:$0xff] %v1784
    %1849 = vst [vmem:[#allocation2 + $0xd0] sm:$0xff] %v1785
    %1850 = vst [vmem:[#allocation2 + $0xd8] sm:$0xff] %v1786
    %1851 = vst [vmem:[#allocation2 + $0xe0] sm:$0xff] %v1787
    %1852 = vst [vmem:[#allocation2 + $0xe8] sm:$0xff] %v1788
    %1853 = vst [vmem:[#allocation2 + $0xf0] sm:$0xff] %v1789
    %1854 = vst [vmem:[#allocation2 + $0xf8] sm:$0xff] %v1790
    %1855 = vst [vmem:[#allocation2 + $0x100] sm:$0xff] %v1791
    %1856 = vst [vmem:[#allocation2 + $0x108] sm:$0xff] %v1792
    %1857 = vst [vmem:[#allocation2 + $0x110] sm:$0xff] %v1793
    %1858 = vst [vmem:[#allocation2 + $0x118] sm:$0xff] %v1794
    %1859 = vst [vmem:[#allocation2 + $0x120] sm:$0xff] %v1795
    %1860 = vst [vmem:[#allocation2 + $0x128] sm:$0xff] %v1796
    %1861 = vst [vmem:[#allocation2 + $0x130] sm:$0xff] %v1797
    %1862 = vst [vmem:[#allocation2 + $0x138] sm:$0xff] %v1798
    %1863 = vst [vmem:[#allocation2 + $0x140] sm:$0xff] %v1799
    %1864 = vst [vmem:[#allocation2 + $0x148] sm:$0xff] %v1800
    %1865 = vst [vmem:[#allocation2 + $0x150] sm:$0xff] %v1801
    %1866 = vst [vmem:[#allocation2 + $0x158] sm:$0xff] %v1802
    %1867 = vst [vmem:[#allocation2 + $0x160] sm:$0xff] %v1803
    %1868 = vst [vmem:[#allocation2 + $0x168] sm:$0xff] %v1804
    %1869 = vst [vmem:[#allocation2 + $0x170] sm:$0xff] %v1805
    %1870 = vst [vmem:[#allocation2 + $0x178] sm:$0xff] %v1806
    %1871 = vst [vmem:[#allocation2 + $0x180] sm:$0xff] %v1807
    %1872 = vst [vmem:[#allocation2 + $0x188] sm:$0xff] %v1808
    %1873 = vst [vmem:[#allocation2 + $0x190] sm:$0xff] %v1809
    %1874 = vst [vmem:[#allocation2 + $0x198] sm:$0xff] %v1810
    %1875 = vst [vmem:[#allocation2 + $0x1a0] sm:$0xff] %v1811
    %1876 = vst [vmem:[#allocation2 + $0x1a8] sm:$0xff] %v1812
    %1877 = vst [vmem:[#allocation2 + $0x1b0] sm:$0xff] %v1813
    %1878 = vst [vmem:[#allocation2 + $0x1b8] sm:$0xff] %v1814
    %1879 = vst [vmem:[#allocation2 + $0x1c0] sm:$0xff] %v1815
    %1880 = vst [vmem:[#allocation2 + $0x1c8] sm:$0xff] %v1816
    %1881 = vst [vmem:[#allocation2 + $0x1d0] sm:$0xff] %v1817
    %1882 = vst [vmem:[#allocation2 + $0x1d8] sm:$0xff] %v1818
    %1883 = vst [vmem:[#allocation2 + $0x1e0] sm:$0xff] %v1819
    %1884 = vst [vmem:[#allocation2 + $0x1e8] sm:$0xff] %v1820
    %1885 = vst [vmem:[#allocation2 + $0x1f0] sm:$0xff] %v1821
    %1886 = vst [vmem:[#allocation2 + $0x1f8] sm:$0xff] %v1822
    // Predicated region
    $region18: #{tpu_custom_call.1} parent=1 // pred_check
      %p1887 = pneg %p16
    $region19: #{tpu_custom_call.1} parent=1 // pred_check_branch
      %1889 = sbr.rel (%p1887) target = $region21
    $region20: #{tpu_custom_call.1} parent=1 // pred_region
      %v1890 = vld [vmem:[#allocation2] sm:$0xff]
      %v1891 = vld [vmem:[#allocation2 + $0x8] sm:$0xff]
      %v1892 = vld [vmem:[#allocation2 + $0x10] sm:$0xff]
      %v1893 = vld [vmem:[#allocation2 + $0x18] sm:$0xff]
      %v1894 = vld [vmem:[#allocation2 + $0x20] sm:$0xff]
      %v1895 = vld [vmem:[#allocation2 + $0x28] sm:$0xff]
      %v1896 = vld [vmem:[#allocation2 + $0x30] sm:$0xff]
      %v1897 = vld [vmem:[#allocation2 + $0x38] sm:$0xff]
      %v1898 = vld [vmem:[#allocation2 + $0x40] sm:$0xff]
      %v1899 = vld [vmem:[#allocation2 + $0x48] sm:$0xff]
      %v1900 = vld [vmem:[#allocation2 + $0x50] sm:$0xff]
      %v1901 = vld [vmem:[#allocation2 + $0x58] sm:$0xff]
      %v1902 = vld [vmem:[#allocation2 + $0x60] sm:$0xff]
      %v1903 = vld [vmem:[#allocation2 + $0x68] sm:$0xff]
      %v1904 = vld [vmem:[#allocation2 + $0x70] sm:$0xff]
      %v1905 = vld [vmem:[#allocation2 + $0x78] sm:$0xff]
      %v1906 = vld [vmem:[#allocation2 + $0x80] sm:$0xff]
      %v1907 = vld [vmem:[#allocation2 + $0x88] sm:$0xff]
      %v1908 = vld [vmem:[#allocation2 + $0x90] sm:$0xff]
      %v1909 = vld [vmem:[#allocation2 + $0x98] sm:$0xff]
      %v1910 = vld [vmem:[#allocation2 + $0xa0] sm:$0xff]
      %v1911 = vld [vmem:[#allocation2 + $0xa8] sm:$0xff]
      %v1912 = vld [vmem:[#allocation2 + $0xb0] sm:$0xff]
      %v1913 = vld [vmem:[#allocation2 + $0xb8] sm:$0xff]
      %v1914 = vld [vmem:[#allocation2 + $0xc0] sm:$0xff]
      %v1915 = vld [vmem:[#allocation2 + $0xc8] sm:$0xff]
      %v1916 = vld [vmem:[#allocation2 + $0xd0] sm:$0xff]
      %v1917 = vld [vmem:[#allocation2 + $0xd8] sm:$0xff]
      %v1918 = vld [vmem:[#allocation2 + $0xe0] sm:$0xff]
      %v1919 = vld [vmem:[#allocation2 + $0xe8] sm:$0xff]
      %v1920 = vld [vmem:[#allocation2 + $0xf0] sm:$0xff]
      %v1921 = vld [vmem:[#allocation2 + $0xf8] sm:$0xff]
      %v1922 = vld [vmem:[#allocation2 + $0x100] sm:$0xff]
      %v1923 = vld [vmem:[#allocation2 + $0x108] sm:$0xff]
      %v1924 = vld [vmem:[#allocation2 + $0x110] sm:$0xff]
      %v1925 = vld [vmem:[#allocation2 + $0x118] sm:$0xff]
      %v1926 = vld [vmem:[#allocation2 + $0x120] sm:$0xff]
      %v1927 = vld [vmem:[#allocation2 + $0x128] sm:$0xff]
      %v1928 = vld [vmem:[#allocation2 + $0x130] sm:$0xff]
      %v1929 = vld [vmem:[#allocation2 + $0x138] sm:$0xff]
      %v1930 = vld [vmem:[#allocation2 + $0x140] sm:$0xff]
      %v1931 = vld [vmem:[#allocation2 + $0x148] sm:$0xff]
      %v1932 = vld [vmem:[#allocation2 + $0x150] sm:$0xff]
      %v1933 = vld [vmem:[#allocation2 + $0x158] sm:$0xff]
      %v1934 = vld [vmem:[#allocation2 + $0x160] sm:$0xff]
      %v1935 = vld [vmem:[#allocation2 + $0x168] sm:$0xff]
      %v1936 = vld [vmem:[#allocation2 + $0x170] sm:$0xff]
      %v1937 = vld [vmem:[#allocation2 + $0x178] sm:$0xff]
      %v1938 = vld [vmem:[#allocation2 + $0x180] sm:$0xff]
      %v1939 = vld [vmem:[#allocation2 + $0x188] sm:$0xff]
      %v1940 = vld [vmem:[#allocation2 + $0x190] sm:$0xff]
      %v1941 = vld [vmem:[#allocation2 + $0x198] sm:$0xff]
      %v1942 = vld [vmem:[#allocation2 + $0x1a0] sm:$0xff]
      %v1943 = vld [vmem:[#allocation2 + $0x1a8] sm:$0xff]
      %v1944 = vld [vmem:[#allocation2 + $0x1b0] sm:$0xff]
      %v1945 = vld [vmem:[#allocation2 + $0x1b8] sm:$0xff]
      %v1946 = vld [vmem:[#allocation2 + $0x1c0] sm:$0xff]
      %v1947 = vld [vmem:[#allocation2 + $0x1c8] sm:$0xff]
      %v1948 = vld [vmem:[#allocation2 + $0x1d0] sm:$0xff]
      %v1949 = vld [vmem:[#allocation2 + $0x1d8] sm:$0xff]
      %v1950 = vld [vmem:[#allocation2 + $0x1e0] sm:$0xff]
      %v1951 = vld [vmem:[#allocation2 + $0x1e8] sm:$0xff]
      %v1952 = vld [vmem:[#allocation2 + $0x1f0] sm:$0xff]
      %v1953 = vld [vmem:[#allocation2 + $0x1f8] sm:$0xff]
      %v1954 = vld [vmem:[%s2] sm:$0x1]
      %v1956 = vlaneseq
      %v1957 = vshrl.u32 %v1956, 7
      %v1958 = vsub.s32 0, %v1957
      %v1959 = vrot.slane %v1954, %v1958
      %v1961 = vadd.f32 %v1890, %v1959
      %v1962 = vadd.f32 %v1891, %v1959
      %v1963 = vadd.f32 %v1892, %v1959
      %v1964 = vadd.f32 %v1893, %v1959
      %v1965 = vadd.f32 %v1894, %v1959
      %v1966 = vadd.f32 %v1895, %v1959
      %v1967 = vadd.f32 %v1896, %v1959
      %v1968 = vadd.f32 %v1897, %v1959
      %v1969 = vadd.f32 %v1898, %v1959
      %v1970 = vadd.f32 %v1899, %v1959
      %v1971 = vadd.f32 %v1900, %v1959
      %v1972 = vadd.f32 %v1901, %v1959
      %v1973 = vadd.f32 %v1902, %v1959
      %v1974 = vadd.f32 %v1903, %v1959
      %v1975 = vadd.f32 %v1904, %v1959
      %v1976 = vadd.f32 %v1905, %v1959
      %v1977 = vadd.f32 %v1906, %v1959
      %v1978 = vadd.f32 %v1907, %v1959
      %v1979 = vadd.f32 %v1908, %v1959
      %v1980 = vadd.f32 %v1909, %v1959
      %v1981 = vadd.f32 %v1910, %v1959
      %v1982 = vadd.f32 %v1911, %v1959
      %v1983 = vadd.f32 %v1912, %v1959
      %v1984 = vadd.f32 %v1913, %v1959
      %v1985 = vadd.f32 %v1914, %v1959
      %v1986 = vadd.f32 %v1915, %v1959
      %v1987 = vadd.f32 %v1916, %v1959
      %v1988 = vadd.f32 %v1917, %v1959
      %v1989 = vadd.f32 %v1918, %v1959
      %v1990 = vadd.f32 %v1919, %v1959
      %v1991 = vadd.f32 %v1920, %v1959
      %v1992 = vadd.f32 %v1921, %v1959
      %v1993 = vadd.f32 %v1922, %v1959
      %v1994 = vadd.f32 %v1923, %v1959
      %v1995 = vadd.f32 %v1924, %v1959
      %v1996 = vadd.f32 %v1925, %v1959
      %v1997 = vadd.f32 %v1926, %v1959
      %v1998 = vadd.f32 %v1927, %v1959
      %v1999 = vadd.f32 %v1928, %v1959
      %v2000 = vadd.f32 %v1929, %v1959
      %v2001 = vadd.f32 %v1930, %v1959
      %v2002 = vadd.f32 %v1931, %v1959
      %v2003 = vadd.f32 %v1932, %v1959
      %v2004 = vadd.f32 %v1933, %v1959
      %v2005 = vadd.f32 %v1934, %v1959
      %v2006 = vadd.f32 %v1935, %v1959
      %v2007 = vadd.f32 %v1936, %v1959
      %v2008 = vadd.f32 %v1937, %v1959
      %v2009 = vadd.f32 %v1938, %v1959
      %v2010 = vadd.f32 %v1939, %v1959
      %v2011 = vadd.f32 %v1940, %v1959
      %v2012 = vadd.f32 %v1941, %v1959
      %v2013 = vadd.f32 %v1942, %v1959
      %v2014 = vadd.f32 %v1943, %v1959
      %v2015 = vadd.f32 %v1944, %v1959
      %v2016 = vadd.f32 %v1945, %v1959
      %v2017 = vadd.f32 %v1946, %v1959
      %v2018 = vadd.f32 %v1947, %v1959
      %v2019 = vadd.f32 %v1948, %v1959
      %v2020 = vadd.f32 %v1949, %v1959
      %v2021 = vadd.f32 %v1950, %v1959
      %v2022 = vadd.f32 %v1951, %v1959
      %v2023 = vadd.f32 %v1952, %v1959
      %v2024 = vadd.f32 %v1953, %v1959
      %v2025 = vpack.c.bf16 %v1962, %v1961
      %v2026 = vpack.c.bf16 %v1964, %v1963
      %v2027 = vpack.c.bf16 %v1966, %v1965
      %v2028 = vpack.c.bf16 %v1968, %v1967
      %v2029 = vpack.c.bf16 %v1970, %v1969
      %v2030 = vpack.c.bf16 %v1972, %v1971
      %v2031 = vpack.c.bf16 %v1974, %v1973
      %v2032 = vpack.c.bf16 %v1976, %v1975
      %v2033 = vpack.c.bf16 %v1978, %v1977
      %v2034 = vpack.c.bf16 %v1980, %v1979
      %v2035 = vpack.c.bf16 %v1982, %v1981
      %v2036 = vpack.c.bf16 %v1984, %v1983
      %v2037 = vpack.c.bf16 %v1986, %v1985
      %v2038 = vpack.c.bf16 %v1988, %v1987
      %v2039 = vpack.c.bf16 %v1990, %v1989
      %v2040 = vpack.c.bf16 %v1992, %v1991
      %v2041 = vpack.c.bf16 %v1994, %v1993
      %v2042 = vpack.c.bf16 %v1996, %v1995
      %v2043 = vpack.c.bf16 %v1998, %v1997
      %v2044 = vpack.c.bf16 %v2000, %v1999
      %v2045 = vpack.c.bf16 %v2002, %v2001
      %v2046 = vpack.c.bf16 %v2004, %v2003
      %v2047 = vpack.c.bf16 %v2006, %v2005
      %v2048 = vpack.c.bf16 %v2008, %v2007
      %v2049 = vpack.c.bf16 %v2010, %v2009
      %v2050 = vpack.c.bf16 %v2012, %v2011
      %v2051 = vpack.c.bf16 %v2014, %v2013
      %v2052 = vpack.c.bf16 %v2016, %v2015
      %v2053 = vpack.c.bf16 %v2018, %v2017
      %v2054 = vpack.c.bf16 %v2020, %v2019
      %v2055 = vpack.c.bf16 %v2022, %v2021
      %v2056 = vpack.c.bf16 %v2024, %v2023
      %v2089 = vunpack.c.l.b16 %v2025
      %v2090 = vunpack.c.h.b16 %v2025
      %v2091 = vunpack.c.l.b16 %v2026
      %v2092 = vunpack.c.h.b16 %v2026
      %v2093 = vunpack.c.l.b16 %v2027
      %v2094 = vunpack.c.h.b16 %v2027
      %v2095 = vunpack.c.l.b16 %v2028
      %v2096 = vunpack.c.h.b16 %v2028
      %v2097 = vunpack.c.l.b16 %v2029
      %v2098 = vunpack.c.h.b16 %v2029
      %v2099 = vunpack.c.l.b16 %v2030
      %v2100 = vunpack.c.h.b16 %v2030
      %v2101 = vunpack.c.l.b16 %v2031
      %v2102 = vunpack.c.h.b16 %v2031
      %v2103 = vunpack.c.l.b16 %v2032
      %v2104 = vunpack.c.h.b16 %v2032
      %v2105 = vunpack.c.l.b16 %v2033
      %v2106 = vunpack.c.h.b16 %v2033
      %v2107 = vunpack.c.l.b16 %v2034
      %v2108 = vunpack.c.h.b16 %v2034
      %v2109 = vunpack.c.l.b16 %v2035
      %v2110 = vunpack.c.h.b16 %v2035
      %v2111 = vunpack.c.l.b16 %v2036
      %v2112 = vunpack.c.h.b16 %v2036
      %v2113 = vunpack.c.l.b16 %v2037
      %v2114 = vunpack.c.h.b16 %v2037
      %v2115 = vunpack.c.l.b16 %v2038
      %v2116 = vunpack.c.h.b16 %v2038
      %v2117 = vunpack.c.l.b16 %v2039
      %v2118 = vunpack.c.h.b16 %v2039
      %v2119 = vunpack.c.l.b16 %v2040
      %v2120 = vunpack.c.h.b16 %v2040
      %v2121 = vunpack.c.l.b16 %v2041
      %v2122 = vunpack.c.h.b16 %v2041
      %v2123 = vunpack.c.l.b16 %v2042
      %v2124 = vunpack.c.h.b16 %v2042
      %v2125 = vunpack.c.l.b16 %v2043
      %v2126 = vunpack.c.h.b16 %v2043
      %v2127 = vunpack.c.l.b16 %v2044
      %v2128 = vunpack.c.h.b16 %v2044
      %v2129 = vunpack.c.l.b16 %v2045
      %v2130 = vunpack.c.h.b16 %v2045
      %v2131 = vunpack.c.l.b16 %v2046
      %v2132 = vunpack.c.h.b16 %v2046
      %v2133 = vunpack.c.l.b16 %v2047
      %v2134 = vunpack.c.h.b16 %v2047
      %v2135 = vunpack.c.l.b16 %v2048
      %v2136 = vunpack.c.h.b16 %v2048
      %v2137 = vunpack.c.l.b16 %v2049
      %v2138 = vunpack.c.h.b16 %v2049
      %v2139 = vunpack.c.l.b16 %v2050
      %v2140 = vunpack.c.h.b16 %v2050
      %v2141 = vunpack.c.l.b16 %v2051
      %v2142 = vunpack.c.h.b16 %v2051
      %v2143 = vunpack.c.l.b16 %v2052
      %v2144 = vunpack.c.h.b16 %v2052
      %v2145 = vunpack.c.l.b16 %v2053
      %v2146 = vunpack.c.h.b16 %v2053
      %v2147 = vunpack.c.l.b16 %v2054
      %v2148 = vunpack.c.h.b16 %v2054
      %v2149 = vunpack.c.l.b16 %v2055
      %v2150 = vunpack.c.h.b16 %v2055
      %v2151 = vunpack.c.l.b16 %v2056
      %v2152 = vunpack.c.h.b16 %v2056
      %v2153 = vpack.c.b16 %v2089, %v2089
      %v2154 = vpack.c.b16 %v2090, %v2090
      %v2155 = vpack.c.b16 %v2091, %v2091
      %v2156 = vpack.c.b16 %v2092, %v2092
      %v2157 = vpack.c.b16 %v2093, %v2093
      %v2158 = vpack.c.b16 %v2094, %v2094
      %v2159 = vpack.c.b16 %v2095, %v2095
      %v2160 = vpack.c.b16 %v2096, %v2096
      %v2161 = vpack.c.b16 %v2097, %v2097
      %v2162 = vpack.c.b16 %v2098, %v2098
      %v2163 = vpack.c.b16 %v2099, %v2099
      %v2164 = vpack.c.b16 %v2100, %v2100
      %v2165 = vpack.c.b16 %v2101, %v2101
      %v2166 = vpack.c.b16 %v2102, %v2102
      %v2167 = vpack.c.b16 %v2103, %v2103
      %v2168 = vpack.c.b16 %v2104, %v2104
      %v2169 = vpack.c.b16 %v2105, %v2105
      %v2170 = vpack.c.b16 %v2106, %v2106
      %v2171 = vpack.c.b16 %v2107, %v2107
      %v2172 = vpack.c.b16 %v2108, %v2108
      %v2173 = vpack.c.b16 %v2109, %v2109
      %v2174 = vpack.c.b16 %v2110, %v2110
      %v2175 = vpack.c.b16 %v2111, %v2111
      %v2176 = vpack.c.b16 %v2112, %v2112
      %v2177 = vpack.c.b16 %v2113, %v2113
      %v2178 = vpack.c.b16 %v2114, %v2114
      %v2179 = vpack.c.b16 %v2115, %v2115
      %v2180 = vpack.c.b16 %v2116, %v2116
      %v2181 = vpack.c.b16 %v2117, %v2117
      %v2182 = vpack.c.b16 %v2118, %v2118
      %v2183 = vpack.c.b16 %v2119, %v2119
      %v2184 = vpack.c.b16 %v2120, %v2120
      %v2185 = vpack.c.b16 %v2121, %v2121
      %v2186 = vpack.c.b16 %v2122, %v2122
      %v2187 = vpack.c.b16 %v2123, %v2123
      %v2188 = vpack.c.b16 %v2124, %v2124
      %v2189 = vpack.c.b16 %v2125, %v2125
      %v2190 = vpack.c.b16 %v2126, %v2126
      %v2191 = vpack.c.b16 %v2127, %v2127
      %v2192 = vpack.c.b16 %v2128, %v2128
      %v2193 = vpack.c.b16 %v2129, %v2129
      %v2194 = vpack.c.b16 %v2130, %v2130
      %v2195 = vpack.c.b16 %v2131, %v2131
      %v2196 = vpack.c.b16 %v2132, %v2132
      %v2197 = vpack.c.b16 %v2133, %v2133
      %v2198 = vpack.c.b16 %v2134, %v2134
      %v2199 = vpack.c.b16 %v2135, %v2135
      %v2200 = vpack.c.b16 %v2136, %v2136
      %v2201 = vpack.c.b16 %v2137, %v2137
      %v2202 = vpack.c.b16 %v2138, %v2138
      %v2203 = vpack.c.b16 %v2139, %v2139
      %v2204 = vpack.c.b16 %v2140, %v2140
      %v2205 = vpack.c.b16 %v2141, %v2141
      %v2206 = vpack.c.b16 %v2142, %v2142
      %v2207 = vpack.c.b16 %v2143, %v2143
      %v2208 = vpack.c.b16 %v2144, %v2144
      %v2209 = vpack.c.b16 %v2145, %v2145
      %v2210 = vpack.c.b16 %v2146, %v2146
      %v2211 = vpack.c.b16 %v2147, %v2147
      %v2212 = vpack.c.b16 %v2148, %v2148
      %v2213 = vpack.c.b16 %v2149, %v2149
      %v2214 = vpack.c.b16 %v2150, %v2150
      %v2215 = vpack.c.b16 %v2151, %v2151
      %v2216 = vpack.c.b16 %v2152, %v2152
      %2281 = vst [vmem:[#allocation3] sm:$0xf] %v2153
      %2282 = vst [vmem:[#allocation3 + $0x4] sm:$0xf] %v2154
      %2283 = vst [vmem:[#allocation3 + $0x8] sm:$0xf] %v2155
      %2284 = vst [vmem:[#allocation3 + $0xc] sm:$0xf] %v2156
      %2285 = vst [vmem:[#allocation3 + $0x10] sm:$0xf] %v2157
      %2286 = vst [vmem:[#allocation3 + $0x14] sm:$0xf] %v2158
      %2287 = vst [vmem:[#allocation3 + $0x18] sm:$0xf] %v2159
      %2288 = vst [vmem:[#allocation3 + $0x1c] sm:$0xf] %v2160
      %2289 = vst [vmem:[#allocation3 + $0x20] sm:$0xf] %v2161
      %2290 = vst [vmem:[#allocation3 + $0x24] sm:$0xf] %v2162
      %2291 = vst [vmem:[#allocation3 + $0x28] sm:$0xf] %v2163
      %2292 = vst [vmem:[#allocation3 + $0x2c] sm:$0xf] %v2164
      %2293 = vst [vmem:[#allocation3 + $0x30] sm:$0xf] %v2165
      %2294 = vst [vmem:[#allocation3 + $0x34] sm:$0xf] %v2166
      %2295 = vst [vmem:[#allocation3 + $0x38] sm:$0xf] %v2167
      %2296 = vst [vmem:[#allocation3 + $0x3c] sm:$0xf] %v2168
      %2297 = vst [vmem:[#allocation3 + $0x40] sm:$0xf] %v2169
      %2298 = vst [vmem:[#allocation3 + $0x44] sm:$0xf] %v2170
      %2299 = vst [vmem:[#allocation3 + $0x48] sm:$0xf] %v2171
      %2300 = vst [vmem:[#allocation3 + $0x4c] sm:$0xf] %v2172
      %2301 = vst [vmem:[#allocation3 + $0x50] sm:$0xf] %v2173
      %2302 = vst [vmem:[#allocation3 + $0x54] sm:$0xf] %v2174
      %2303 = vst [vmem:[#allocation3 + $0x58] sm:$0xf] %v2175
      %2304 = vst [vmem:[#allocation3 + $0x5c] sm:$0xf] %v2176
      %2305 = vst [vmem:[#allocation3 + $0x60] sm:$0xf] %v2177
      %2306 = vst [vmem:[#allocation3 + $0x64] sm:$0xf] %v2178
      %2307 = vst [vmem:[#allocation3 + $0x68] sm:$0xf] %v2179
      %2308 = vst [vmem:[#allocation3 + $0x6c] sm:$0xf] %v2180
      %2309 = vst [vmem:[#allocation3 + $0x70] sm:$0xf] %v2181
      %2310 = vst [vmem:[#allocation3 + $0x74] sm:$0xf] %v2182
      %2311 = vst [vmem:[#allocation3 + $0x78] sm:$0xf] %v2183
      %2312 = vst [vmem:[#allocation3 + $0x7c] sm:$0xf] %v2184
      %2313 = vst [vmem:[#allocation3 + $0x80] sm:$0xf] %v2185
      %2314 = vst [vmem:[#allocation3 + $0x84] sm:$0xf] %v2186
      %2315 = vst [vmem:[#allocation3 + $0x88] sm:$0xf] %v2187
      %2316 = vst [vmem:[#allocation3 + $0x8c] sm:$0xf] %v2188
      %2317 = vst [vmem:[#allocation3 + $0x90] sm:$0xf] %v2189
      %2318 = vst [vmem:[#allocation3 + $0x94] sm:$0xf] %v2190
      %2319 = vst [vmem:[#allocation3 + $0x98] sm:$0xf] %v2191
      %2320 = vst [vmem:[#allocation3 + $0x9c] sm:$0xf] %v2192
      %2321 = vst [vmem:[#allocation3 + $0xa0] sm:$0xf] %v2193
      %2322 = vst [vmem:[#allocation3 + $0xa4] sm:$0xf] %v2194
      %2323 = vst [vmem:[#allocation3 + $0xa8] sm:$0xf] %v2195
      %2324 = vst [vmem:[#allocation3 + $0xac] sm:$0xf] %v2196
      %2325 = vst [vmem:[#allocation3 + $0xb0] sm:$0xf] %v2197
      %2326 = vst [vmem:[#allocation3 + $0xb4] sm:$0xf] %v2198
      %2327 = vst [vmem:[#allocation3 + $0xb8] sm:$0xf] %v2199
      %2328 = vst [vmem:[#allocation3 + $0xbc] sm:$0xf] %v2200
      %2329 = vst [vmem:[#allocation3 + $0xc0] sm:$0xf] %v2201
      %2330 = vst [vmem:[#allocation3 + $0xc4] sm:$0xf] %v2202
      %2331 = vst [vmem:[#allocation3 + $0xc8] sm:$0xf] %v2203
      %2332 = vst [vmem:[#allocation3 + $0xcc] sm:$0xf] %v2204
      %2333 = vst [vmem:[#allocation3 + $0xd0] sm:$0xf] %v2205
      %2334 = vst [vmem:[#allocation3 + $0xd4] sm:$0xf] %v2206
      %2335 = vst [vmem:[#allocation3 + $0xd8] sm:$0xf] %v2207
      %2336 = vst [vmem:[#allocation3 + $0xdc] sm:$0xf] %v2208
      %2337 = vst [vmem:[#allocation3 + $0xe0] sm:$0xf] %v2209
      %2338 = vst [vmem:[#allocation3 + $0xe4] sm:$0xf] %v2210
      %2339 = vst [vmem:[#allocation3 + $0xe8] sm:$0xf] %v2211
      %2340 = vst [vmem:[#allocation3 + $0xec] sm:$0xf] %v2212
      %2341 = vst [vmem:[#allocation3 + $0xf0] sm:$0xf] %v2213
      %2342 = vst [vmem:[#allocation3 + $0xf4] sm:$0xf] %v2214
      %2343 = vst [vmem:[#allocation3 + $0xf8] sm:$0xf] %v2215
      %2344 = vst [vmem:[#allocation3 + $0xfc] sm:$0xf] %v2216
    $region21: #{tpu_custom_call.1} parent=1 // pred_fallthru
      _
    // Predicated region
    $region22: #{tpu_custom_call.1} parent=1 // pred_check
      _
    $region23: #{tpu_custom_call.1} parent=1 // pred_check_branch
      %2346 = sbr.rel (0) target = $region25
    $region24: #{tpu_custom_call.1} parent=1 // pred_region
      %s2348 = ssub.s32 4096, 4096
      %2349 = vsyncadd [#allocation4], %s2348
      %s2350 = sshll.u32 [#allocation3], 4
      %s2351 = int_to_ptr.vmem [resolvable:$true] %s2350
      %2356 = dma.vmem_to_hbm [thread:$0]  %s2351, 4096, %s3, [#allocation4], 64, 64, 4
    $region25: #{tpu_custom_call.1} parent=1 // pred_fallthru
      _
    // Predicated region
    $region26: #{tpu_custom_call.1} parent=1 // pred_check
      _
    $region27: #{tpu_custom_call.1} parent=1 // pred_check_branch
      %2358 = sbr.rel (0) target = $region29
    $region28: #{tpu_custom_call.1} parent=1 // pred_region
      %2359 = dma.done [#allocation4], 4096
    $region29: #{tpu_custom_call.1} parent=1 // pred_fallthru
      _
    %2360 = vsyncpa [#allocation4], 1

</llo_original>
